<compile_context>
chip_gen: v7x
topology: tpu7x:2x2x1
jax: 0.10.0
libtpu: 0.0.40
codegen_flags: <defaults>
</compile_context>

<pallas_src>
import jax
import jax.numpy as jnp
import numpy as np
from jax.experimental import pallas as pl
from jax.experimental.pallas import tpu as pltpu

# ---- model hyper-parameters (from the PyTorch script) ----
HIDDEN_SIZE = 6
INPUT_SIZE = 1
NUM_CLASSES = 1
NUM_LAYERS = 1   # kernel implements the single-layer case used by the module
SEQ_LENGTH = 14


def lstm_fc_kernel(x_ref, w_ih_ref, w_hh_ref, b_ref, fc_w_ref, fc_b_ref,
                   out_ref):
    """LSTM recurrence + final Linear in a single kernel invocation.

    x_ref:     (B, T*I)   lane-dense input, x[b, t*I + i]
    w_ih_ref:  (I, 4H)    input->gate weights, gate blocks [i, f, g, o] along
                          lanes; g-gate block pre-scaled by 2
    w_hh_ref:  (H, 4H)    hidden->gate weights (g-gate block pre-scaled by 2)
    b_ref:     (1, 4H)    combined bias b_ih + b_hh (g-gate block * 2)
    fc_w_ref:  (C, H)     final Linear weight (PyTorch layout)
    fc_b_ref:  (1, C)     final Linear bias
    out_ref:   (B, C)     fc(h_T)
    """
    B = x_ref.shape[0]
    I, G4 = w_ih_ref.shape
    H = G4 // 4
    T = x_ref.shape[1] // I

    x = x_ref[...]                         # (B, T*I)
    w_ih = w_ih_ref[...]                   # (I, 4H)
    w_hh = w_hh_ref[...]                   # (H, 4H)
    bias = b_ref[...]                      # (1, 4H)

    # ---- hoisted input projection + bias, kept as SSA values (T vregs):
    #      gx[t][b, :] = sum_i x[b, t*I+i] * w_ih[i, :] + bias
    # Independent of h, so it sits off the serial h->h critical chain.
    gx = []
    for t in range(T):
        g = bias + x[:, t * I:t * I + 1] * w_ih[0:1, :]          # (B, 4H)
        for i in range(1, I):  # static; I == 1 for this module
            g = g + x[:, t * I + i:t * I + i + 1] * w_ih[i:i + 1, :]
        gx.append(g)

    # ---- recurrence, fully unrolled (T is static and small) ----
    h = jnp.zeros((B, H), jnp.float32)
    c = jnp.zeros((B, H), jnp.float32)
    for t in range(T):
        if t == 0:
            gates = gx[0]                                         # h_0 == 0
        else:
            # lane-dense (B, 4H) hidden projection on the MXU
            gates = gx[t] + jnp.dot(h, w_hh,
                                    preferred_element_type=jnp.float32)
        sig = jax.nn.sigmoid(gates)                               # one EUP pass
        i_g = sig[:, 0:H]
        f_g = sig[:, H:2 * H]
        g_g = 2.0 * sig[:, 2 * H:3 * H] - 1.0                     # tanh(z)=2*sig(2z)-1
        o_g = sig[:, 3 * H:4 * H]
        c = i_g * g_g if t == 0 else f_g * c + i_g * g_g          # c_0 == 0
        h = o_g * jnp.tanh(c)

    # ---- final Linear: out = h_T @ fc_w^T + fc_b (once, off the hot loop) ----
    fc_w = fc_w_ref[...]                                          # (C, H)
    out = jnp.sum(h[:, None, :] * fc_w[None, :, :], axis=-1) + fc_b_ref[...]
    out_ref[...] = out


def init_params(key, input_size=INPUT_SIZE, hidden_size=HIDDEN_SIZE,
                num_classes=NUM_CLASSES):
    """Deterministic parameter init (PyTorch-style uniform(-1/sqrt(H), 1/sqrt(H)))."""
    k = 1.0 / np.sqrt(hidden_size)
    ks = jax.random.split(key, 6)
    w_ih = jax.random.uniform(ks[0], (4 * hidden_size, input_size),
                              jnp.float32, -k, k)
    w_hh = jax.random.uniform(ks[1], (4 * hidden_size, hidden_size),
                              jnp.float32, -k, k)
    b_ih = jax.random.uniform(ks[2], (4 * hidden_size,), jnp.float32, -k, k)
    b_hh = jax.random.uniform(ks[3], (4 * hidden_size,), jnp.float32, -k, k)
    fc_w = jax.random.uniform(ks[4], (num_classes, hidden_size),
                              jnp.float32, -k, k)
    fc_b = jax.random.uniform(ks[5], (num_classes,), jnp.float32, -k, k)
    return dict(w_ih=w_ih, w_hh=w_hh, b_ih=b_ih, b_hh=b_hh,
                fc_w=fc_w, fc_b=fc_b)


def prepare_params(params):
    """One-time re-layout of PyTorch-style LSTM/Linear params for the kernel.

    Gate order is PyTorch's [i, f, g, o]; the g-gate block is pre-scaled by 2
    so tanh(z) = 2*sigmoid(2z) - 1 can be recovered from the single in-kernel
    sigmoid. Call once; reuse the result across forward calls.
    """
    H = params["w_hh"].shape[1]
    C = params["fc_w"].shape[0]
    scale = jnp.ones((4 * H,), jnp.float32).at[2 * H:3 * H].set(2.0)
    w_ih2d = params["w_ih"].astype(jnp.float32).T * scale[None, :]   # (I, 4H)
    w_hh2d = params["w_hh"].astype(jnp.float32).T * scale[None, :]   # (H, 4H)
    b2d = ((params["b_ih"] + params["b_hh"]).astype(jnp.float32)
           * scale).reshape(1, 4 * H)                                # (1, 4H)
    fc_w = params["fc_w"].astype(jnp.float32)                        # (C, H)
    fc_b = params["fc_b"].astype(jnp.float32).reshape(1, C)          # (1, C)
    return dict(w_ih=w_ih2d, w_hh=w_hh2d, b=b2d, fc_w=fc_w, fc_b=fc_b)


@jax.jit
def lstm_forward(x, prepped):
    """x: (B, T, I) float32 (batch_first, like the PyTorch module). Returns (B, C)."""
    B, T, I = x.shape
    C = prepped["fc_w"].shape[0]
    x_flat = x.astype(jnp.float32).reshape(B, T * I)   # lane-dense (B, T) for I=1

    vmem = pl.BlockSpec(memory_space=pltpu.MemorySpace.VMEM)
    return pl.pallas_call(
        lstm_fc_kernel,
        out_shape=jax.ShapeDtypeStruct((B, C), jnp.float32),
        in_specs=[vmem] * 6,
        out_specs=vmem,
    )(x_flat, prepped["w_ih"], prepped["w_hh"], prepped["b"],
      prepped["fc_w"], prepped["fc_b"])


def lstm_forward_ref(x, params):
    """Pure-JAX reference with the same semantics (for correctness check)."""
    B, T, I = x.shape
    H = params["w_hh"].shape[1]
    h = jnp.zeros((B, H), jnp.float32)
    c = jnp.zeros((B, H), jnp.float32)
    w_ih_t = params["w_ih"].T
    w_hh_t = params["w_hh"].T
    b = params["b_ih"] + params["b_hh"]
    for t in range(T):
        gates = x[:, t, :] @ w_ih_t + h @ w_hh_t + b
        i_g = jax.nn.sigmoid(gates[:, 0 * H:1 * H])
        f_g = jax.nn.sigmoid(gates[:, 1 * H:2 * H])
        g_g = jnp.tanh(gates[:, 2 * H:3 * H])
        o_g = jax.nn.sigmoid(gates[:, 3 * H:4 * H])
        c = f_g * c + i_g * g_g
        h = o_g * jnp.tanh(c)
    return h @ params["fc_w"].T + params["fc_b"]


if __name__ == "__main__":
    key = jax.random.PRNGKey(0)
    pkey, xkey = jax.random.split(key)

    batch = 2
    params = init_params(pkey)
    prepped = prepare_params(params)        # one-time re-layout, reused per call
    x = jax.random.normal(xkey, (batch, SEQ_LENGTH, INPUT_SIZE), jnp.float32)

    out = lstm_forward(x, prepped)
    out = jax.block_until_ready(out)

    ref = lstm_forward_ref(x, params)
    assert out.shape == (batch, NUM_CLASSES)
    # Slightly looser than 1e-5: tanh-via-sigmoid identity, the padded MXU dot,
    # and reordered VPU FMAs shift the result by a few ulps vs. the reference.
    np.testing.assert_allclose(np.asarray(out), np.asarray(ref),
                               rtol=2e-5, atol=2e-5)
    print("KERNEL_OK")
</pallas_src>

<mosaic_0001>
module attributes {stable_mosaic.version = 11 : i64} {
  func.func @lstm_fc_kernel(%arg0: memref<2x14xf32, #tpu.memory_space<vmem>>, %arg1: memref<1x24xf32, #tpu.memory_space<vmem>>, %arg2: memref<6x24xf32, #tpu.memory_space<vmem>>, %arg3: memref<1x24xf32, #tpu.memory_space<vmem>>, %arg4: memref<1x6xf32, #tpu.memory_space<vmem>>, %arg5: memref<1x1xf32, #tpu.memory_space<vmem>>, %arg6: memref<2x1xf32, #tpu.memory_space<vmem>>) attributes {dimension_semantics = [], scalar_prefetch = 0 : i64, scratch_operands = 0 : i64, tpu.core_type = #tpu.core_type<tc>} {
    %c0 = arith.constant 0 : index
    %c0_0 = arith.constant 0 : index
    %0 = vector.load %arg0[%c0, %c0_0] : memref<2x14xf32, #tpu.memory_space<vmem>>, vector<2x14xf32>
    %c0_1 = arith.constant 0 : index
    %c0_2 = arith.constant 0 : index
    %1 = vector.load %arg1[%c0_1, %c0_2] : memref<1x24xf32, #tpu.memory_space<vmem>>, vector<1x24xf32>
    %c0_3 = arith.constant 0 : index
    %c0_4 = arith.constant 0 : index
    %2 = vector.load %arg2[%c0_3, %c0_4] : memref<6x24xf32, #tpu.memory_space<vmem>>, vector<6x24xf32>
    %c0_5 = arith.constant 0 : index
    %c0_6 = arith.constant 0 : index
    %3 = vector.load %arg3[%c0_5, %c0_6] : memref<1x24xf32, #tpu.memory_space<vmem>>, vector<1x24xf32>
    %4 = vector.extract_strided_slice %0 {offsets = [0, 0], sizes = [2, 1], strides = [1, 1]} : vector<2x14xf32> to vector<2x1xf32>
    %5 = vector.broadcast %4 : vector<2x1xf32> to vector<2x24xf32>
    %6 = vector.broadcast %1 : vector<1x24xf32> to vector<2x24xf32>
    %7 = arith.mulf %5, %6 : vector<2x24xf32>
    %8 = vector.broadcast %3 : vector<1x24xf32> to vector<2x24xf32>
    %9 = arith.addf %8, %7 : vector<2x24xf32>
    %10 = vector.extract_strided_slice %0 {offsets = [0, 1], sizes = [2, 1], strides = [1, 1]} : vector<2x14xf32> to vector<2x1xf32>
    %11 = vector.broadcast %10 : vector<2x1xf32> to vector<2x24xf32>
    %12 = vector.broadcast %1 : vector<1x24xf32> to vector<2x24xf32>
    %13 = arith.mulf %11, %12 : vector<2x24xf32>
    %14 = vector.broadcast %3 : vector<1x24xf32> to vector<2x24xf32>
    %15 = arith.addf %14, %13 : vector<2x24xf32>
    %16 = vector.extract_strided_slice %0 {offsets = [0, 2], sizes = [2, 1], strides = [1, 1]} : vector<2x14xf32> to vector<2x1xf32>
    %17 = vector.broadcast %16 : vector<2x1xf32> to vector<2x24xf32>
    %18 = vector.broadcast %1 : vector<1x24xf32> to vector<2x24xf32>
    %19 = arith.mulf %17, %18 : vector<2x24xf32>
    %20 = vector.broadcast %3 : vector<1x24xf32> to vector<2x24xf32>
    %21 = arith.addf %20, %19 : vector<2x24xf32>
    %22 = vector.extract_strided_slice %0 {offsets = [0, 3], sizes = [2, 1], strides = [1, 1]} : vector<2x14xf32> to vector<2x1xf32>
    %23 = vector.broadcast %22 : vector<2x1xf32> to vector<2x24xf32>
    %24 = vector.broadcast %1 : vector<1x24xf32> to vector<2x24xf32>
    %25 = arith.mulf %23, %24 : vector<2x24xf32>
    %26 = vector.broadcast %3 : vector<1x24xf32> to vector<2x24xf32>
    %27 = arith.addf %26, %25 : vector<2x24xf32>
    %28 = vector.extract_strided_slice %0 {offsets = [0, 4], sizes = [2, 1], strides = [1, 1]} : vector<2x14xf32> to vector<2x1xf32>
    %29 = vector.broadcast %28 : vector<2x1xf32> to vector<2x24xf32>
    %30 = vector.broadcast %1 : vector<1x24xf32> to vector<2x24xf32>
    %31 = arith.mulf %29, %30 : vector<2x24xf32>
    %32 = vector.broadcast %3 : vector<1x24xf32> to vector<2x24xf32>
    %33 = arith.addf %32, %31 : vector<2x24xf32>
    %34 = vector.extract_strided_slice %0 {offsets = [0, 5], sizes = [2, 1], strides = [1, 1]} : vector<2x14xf32> to vector<2x1xf32>
    %35 = vector.broadcast %34 : vector<2x1xf32> to vector<2x24xf32>
    %36 = vector.broadcast %1 : vector<1x24xf32> to vector<2x24xf32>
    %37 = arith.mulf %35, %36 : vector<2x24xf32>
    %38 = vector.broadcast %3 : vector<1x24xf32> to vector<2x24xf32>
    %39 = arith.addf %38, %37 : vector<2x24xf32>
    %40 = vector.extract_strided_slice %0 {offsets = [0, 6], sizes = [2, 1], strides = [1, 1]} : vector<2x14xf32> to vector<2x1xf32>
    %41 = vector.broadcast %40 : vector<2x1xf32> to vector<2x24xf32>
    %42 = vector.broadcast %1 : vector<1x24xf32> to vector<2x24xf32>
    %43 = arith.mulf %41, %42 : vector<2x24xf32>
    %44 = vector.broadcast %3 : vector<1x24xf32> to vector<2x24xf32>
    %45 = arith.addf %44, %43 : vector<2x24xf32>
    %46 = vector.extract_strided_slice %0 {offsets = [0, 7], sizes = [2, 1], strides = [1, 1]} : vector<2x14xf32> to vector<2x1xf32>
    %47 = vector.broadcast %46 : vector<2x1xf32> to vector<2x24xf32>
    %48 = vector.broadcast %1 : vector<1x24xf32> to vector<2x24xf32>
    %49 = arith.mulf %47, %48 : vector<2x24xf32>
    %50 = vector.broadcast %3 : vector<1x24xf32> to vector<2x24xf32>
    %51 = arith.addf %50, %49 : vector<2x24xf32>
    %52 = vector.extract_strided_slice %0 {offsets = [0, 8], sizes = [2, 1], strides = [1, 1]} : vector<2x14xf32> to vector<2x1xf32>
    %53 = vector.broadcast %52 : vector<2x1xf32> to vector<2x24xf32>
    %54 = vector.broadcast %1 : vector<1x24xf32> to vector<2x24xf32>
    %55 = arith.mulf %53, %54 : vector<2x24xf32>
    %56 = vector.broadcast %3 : vector<1x24xf32> to vector<2x24xf32>
    %57 = arith.addf %56, %55 : vector<2x24xf32>
    %58 = vector.extract_strided_slice %0 {offsets = [0, 9], sizes = [2, 1], strides = [1, 1]} : vector<2x14xf32> to vector<2x1xf32>
    %59 = vector.broadcast %58 : vector<2x1xf32> to vector<2x24xf32>
    %60 = vector.broadcast %1 : vector<1x24xf32> to vector<2x24xf32>
    %61 = arith.mulf %59, %60 : vector<2x24xf32>
    %62 = vector.broadcast %3 : vector<1x24xf32> to vector<2x24xf32>
    %63 = arith.addf %62, %61 : vector<2x24xf32>
    %64 = vector.extract_strided_slice %0 {offsets = [0, 10], sizes = [2, 1], strides = [1, 1]} : vector<2x14xf32> to vector<2x1xf32>
    %65 = vector.broadcast %64 : vector<2x1xf32> to vector<2x24xf32>
    %66 = vector.broadcast %1 : vector<1x24xf32> to vector<2x24xf32>
    %67 = arith.mulf %65, %66 : vector<2x24xf32>
    %68 = vector.broadcast %3 : vector<1x24xf32> to vector<2x24xf32>
    %69 = arith.addf %68, %67 : vector<2x24xf32>
    %70 = vector.extract_strided_slice %0 {offsets = [0, 11], sizes = [2, 1], strides = [1, 1]} : vector<2x14xf32> to vector<2x1xf32>
    %71 = vector.broadcast %70 : vector<2x1xf32> to vector<2x24xf32>
    %72 = vector.broadcast %1 : vector<1x24xf32> to vector<2x24xf32>
    %73 = arith.mulf %71, %72 : vector<2x24xf32>
    %74 = vector.broadcast %3 : vector<1x24xf32> to vector<2x24xf32>
    %75 = arith.addf %74, %73 : vector<2x24xf32>
    %76 = vector.extract_strided_slice %0 {offsets = [0, 12], sizes = [2, 1], strides = [1, 1]} : vector<2x14xf32> to vector<2x1xf32>
    %77 = vector.broadcast %76 : vector<2x1xf32> to vector<2x24xf32>
    %78 = vector.broadcast %1 : vector<1x24xf32> to vector<2x24xf32>
    %79 = arith.mulf %77, %78 : vector<2x24xf32>
    %80 = vector.broadcast %3 : vector<1x24xf32> to vector<2x24xf32>
    %81 = arith.addf %80, %79 : vector<2x24xf32>
    %82 = vector.extract_strided_slice %0 {offsets = [0, 13], sizes = [2, 1], strides = [1, 1]} : vector<2x14xf32> to vector<2x1xf32>
    %83 = vector.broadcast %82 : vector<2x1xf32> to vector<2x24xf32>
    %84 = vector.broadcast %1 : vector<1x24xf32> to vector<2x24xf32>
    %85 = arith.mulf %83, %84 : vector<2x24xf32>
    %86 = vector.broadcast %3 : vector<1x24xf32> to vector<2x24xf32>
    %87 = arith.addf %86, %85 : vector<2x24xf32>
    %88 = arith.negf %9 : vector<2x24xf32>
    %89 = math.exp %88 : vector<2x24xf32>
    %cst = arith.constant 1.000000e+00 : f32
    %90 = vector.broadcast %cst : f32 to vector<2x24xf32>
    %91 = arith.addf %90, %89 : vector<2x24xf32>
    %92 = arith.divf %90, %91 : vector<2x24xf32>
    %93 = vector.extract_strided_slice %92 {offsets = [0, 0], sizes = [2, 6], strides = [1, 1]} : vector<2x24xf32> to vector<2x6xf32>
    %94 = vector.extract_strided_slice %92 {offsets = [0, 12], sizes = [2, 6], strides = [1, 1]} : vector<2x24xf32> to vector<2x6xf32>
    %cst_7 = arith.constant 2.000000e+00 : f32
    %95 = vector.broadcast %cst_7 : f32 to vector<2x6xf32>
    %96 = arith.mulf %95, %94 : vector<2x6xf32>
    %cst_8 = arith.constant 1.000000e+00 : f32
    %97 = vector.broadcast %cst_8 : f32 to vector<2x6xf32>
    %98 = arith.subf %96, %97 : vector<2x6xf32>
    %99 = vector.extract_strided_slice %92 {offsets = [0, 18], sizes = [2, 6], strides = [1, 1]} : vector<2x24xf32> to vector<2x6xf32>
    %100 = arith.mulf %93, %98 : vector<2x6xf32>
    %101 = math.tanh %100 : vector<2x6xf32>
    %102 = arith.mulf %99, %101 : vector<2x6xf32>
    %cst_9 = arith.constant dense<0.000000e+00> : vector<2x24xf32>
    %103 = tpu.matmul %102, %2, %cst_9 {dimension_numbers = #tpu.dot_dimension_numbers<[1], [0], [0], [1], [0, 0, 1, 1], [], []>} : vector<2x6xf32>, vector<6x24xf32>, vector<2x24xf32> -> vector<2x24xf32>
    %104 = arith.addf %15, %103 : vector<2x24xf32>
    %105 = arith.negf %104 : vector<2x24xf32>
    %106 = math.exp %105 : vector<2x24xf32>
    %cst_10 = arith.constant 1.000000e+00 : f32
    %107 = vector.broadcast %cst_10 : f32 to vector<2x24xf32>
    %108 = arith.addf %107, %106 : vector<2x24xf32>
    %109 = arith.divf %107, %108 : vector<2x24xf32>
    %110 = vector.extract_strided_slice %109 {offsets = [0, 0], sizes = [2, 6], strides = [1, 1]} : vector<2x24xf32> to vector<2x6xf32>
    %111 = vector.extract_strided_slice %109 {offsets = [0, 6], sizes = [2, 6], strides = [1, 1]} : vector<2x24xf32> to vector<2x6xf32>
    %112 = vector.extract_strided_slice %109 {offsets = [0, 12], sizes = [2, 6], strides = [1, 1]} : vector<2x24xf32> to vector<2x6xf32>
    %cst_11 = arith.constant 2.000000e+00 : f32
    %113 = vector.broadcast %cst_11 : f32 to vector<2x6xf32>
    %114 = arith.mulf %113, %112 : vector<2x6xf32>
    %cst_12 = arith.constant 1.000000e+00 : f32
    %115 = vector.broadcast %cst_12 : f32 to vector<2x6xf32>
    %116 = arith.subf %114, %115 : vector<2x6xf32>
    %117 = vector.extract_strided_slice %109 {offsets = [0, 18], sizes = [2, 6], strides = [1, 1]} : vector<2x24xf32> to vector<2x6xf32>
    %118 = arith.mulf %111, %100 : vector<2x6xf32>
    %119 = arith.mulf %110, %116 : vector<2x6xf32>
    %120 = arith.addf %118, %119 : vector<2x6xf32>
    %121 = math.tanh %120 : vector<2x6xf32>
    %122 = arith.mulf %117, %121 : vector<2x6xf32>
    %cst_13 = arith.constant dense<0.000000e+00> : vector<2x24xf32>
    %123 = tpu.matmul %122, %2, %cst_13 {dimension_numbers = #tpu.dot_dimension_numbers<[1], [0], [0], [1], [0, 0, 1, 1], [], []>} : vector<2x6xf32>, vector<6x24xf32>, vector<2x24xf32> -> vector<2x24xf32>
    %124 = arith.addf %21, %123 : vector<2x24xf32>
    %125 = arith.negf %124 : vector<2x24xf32>
    %126 = math.exp %125 : vector<2x24xf32>
    %cst_14 = arith.constant 1.000000e+00 : f32
    %127 = vector.broadcast %cst_14 : f32 to vector<2x24xf32>
    %128 = arith.addf %127, %126 : vector<2x24xf32>
    %129 = arith.divf %127, %128 : vector<2x24xf32>
    %130 = vector.extract_strided_slice %129 {offsets = [0, 0], sizes = [2, 6], strides = [1, 1]} : vector<2x24xf32> to vector<2x6xf32>
    %131 = vector.extract_strided_slice %129 {offsets = [0, 6], sizes = [2, 6], strides = [1, 1]} : vector<2x24xf32> to vector<2x6xf32>
    %132 = vector.extract_strided_slice %129 {offsets = [0, 12], sizes = [2, 6], strides = [1, 1]} : vector<2x24xf32> to vector<2x6xf32>
    %cst_15 = arith.constant 2.000000e+00 : f32
    %133 = vector.broadcast %cst_15 : f32 to vector<2x6xf32>
    %134 = arith.mulf %133, %132 : vector<2x6xf32>
    %cst_16 = arith.constant 1.000000e+00 : f32
    %135 = vector.broadcast %cst_16 : f32 to vector<2x6xf32>
    %136 = arith.subf %134, %135 : vector<2x6xf32>
    %137 = vector.extract_strided_slice %129 {offsets = [0, 18], sizes = [2, 6], strides = [1, 1]} : vector<2x24xf32> to vector<2x6xf32>
    %138 = arith.mulf %131, %120 : vector<2x6xf32>
    %139 = arith.mulf %130, %136 : vector<2x6xf32>
    %140 = arith.addf %138, %139 : vector<2x6xf32>
    %141 = math.tanh %140 : vector<2x6xf32>
    %142 = arith.mulf %137, %141 : vector<2x6xf32>
    %cst_17 = arith.constant dense<0.000000e+00> : vector<2x24xf32>
    %143 = tpu.matmul %142, %2, %cst_17 {dimension_numbers = #tpu.dot_dimension_numbers<[1], [0], [0], [1], [0, 0, 1, 1], [], []>} : vector<2x6xf32>, vector<6x24xf32>, vector<2x24xf32> -> vector<2x24xf32>
    %144 = arith.addf %27, %143 : vector<2x24xf32>
    %145 = arith.negf %144 : vector<2x24xf32>
    %146 = math.exp %145 : vector<2x24xf32>
    %cst_18 = arith.constant 1.000000e+00 : f32
    %147 = vector.broadcast %cst_18 : f32 to vector<2x24xf32>
    %148 = arith.addf %147, %146 : vector<2x24xf32>
    %149 = arith.divf %147, %148 : vector<2x24xf32>
    %150 = vector.extract_strided_slice %149 {offsets = [0, 0], sizes = [2, 6], strides = [1, 1]} : vector<2x24xf32> to vector<2x6xf32>
    %151 = vector.extract_strided_slice %149 {offsets = [0, 6], sizes = [2, 6], strides = [1, 1]} : vector<2x24xf32> to vector<2x6xf32>
    %152 = vector.extract_strided_slice %149 {offsets = [0, 12], sizes = [2, 6], strides = [1, 1]} : vector<2x24xf32> to vector<2x6xf32>
    %cst_19 = arith.constant 2.000000e+00 : f32
    %153 = vector.broadcast %cst_19 : f32 to vector<2x6xf32>
    %154 = arith.mulf %153, %152 : vector<2x6xf32>
    %cst_20 = arith.constant 1.000000e+00 : f32
    %155 = vector.broadcast %cst_20 : f32 to vector<2x6xf32>
    %156 = arith.subf %154, %155 : vector<2x6xf32>
    %157 = vector.extract_strided_slice %149 {offsets = [0, 18], sizes = [2, 6], strides = [1, 1]} : vector<2x24xf32> to vector<2x6xf32>
    %158 = arith.mulf %151, %140 : vector<2x6xf32>
    %159 = arith.mulf %150, %156 : vector<2x6xf32>
    %160 = arith.addf %158, %159 : vector<2x6xf32>
    %161 = math.tanh %160 : vector<2x6xf32>
    %162 = arith.mulf %157, %161 : vector<2x6xf32>
    %cst_21 = arith.constant dense<0.000000e+00> : vector<2x24xf32>
    %163 = tpu.matmul %162, %2, %cst_21 {dimension_numbers = #tpu.dot_dimension_numbers<[1], [0], [0], [1], [0, 0, 1, 1], [], []>} : vector<2x6xf32>, vector<6x24xf32>, vector<2x24xf32> -> vector<2x24xf32>
    %164 = arith.addf %33, %163 : vector<2x24xf32>
    %165 = arith.negf %164 : vector<2x24xf32>
    %166 = math.exp %165 : vector<2x24xf32>
    %cst_22 = arith.constant 1.000000e+00 : f32
    %167 = vector.broadcast %cst_22 : f32 to vector<2x24xf32>
    %168 = arith.addf %167, %166 : vector<2x24xf32>
    %169 = arith.divf %167, %168 : vector<2x24xf32>
    %170 = vector.extract_strided_slice %169 {offsets = [0, 0], sizes = [2, 6], strides = [1, 1]} : vector<2x24xf32> to vector<2x6xf32>
    %171 = vector.extract_strided_slice %169 {offsets = [0, 6], sizes = [2, 6], strides = [1, 1]} : vector<2x24xf32> to vector<2x6xf32>
    %172 = vector.extract_strided_slice %169 {offsets = [0, 12], sizes = [2, 6], strides = [1, 1]} : vector<2x24xf32> to vector<2x6xf32>
    %cst_23 = arith.constant 2.000000e+00 : f32
    %173 = vector.broadcast %cst_23 : f32 to vector<2x6xf32>
    %174 = arith.mulf %173, %172 : vector<2x6xf32>
    %cst_24 = arith.constant 1.000000e+00 : f32
    %175 = vector.broadcast %cst_24 : f32 to vector<2x6xf32>
    %176 = arith.subf %174, %175 : vector<2x6xf32>
    %177 = vector.extract_strided_slice %169 {offsets = [0, 18], sizes = [2, 6], strides = [1, 1]} : vector<2x24xf32> to vector<2x6xf32>
    %178 = arith.mulf %171, %160 : vector<2x6xf32>
    %179 = arith.mulf %170, %176 : vector<2x6xf32>
    %180 = arith.addf %178, %179 : vector<2x6xf32>
    %181 = math.tanh %180 : vector<2x6xf32>
    %182 = arith.mulf %177, %181 : vector<2x6xf32>
    %cst_25 = arith.constant dense<0.000000e+00> : vector<2x24xf32>
    %183 = tpu.matmul %182, %2, %cst_25 {dimension_numbers = #tpu.dot_dimension_numbers<[1], [0], [0], [1], [0, 0, 1, 1], [], []>} : vector<2x6xf32>, vector<6x24xf32>, vector<2x24xf32> -> vector<2x24xf32>
    %184 = arith.addf %39, %183 : vector<2x24xf32>
    %185 = arith.negf %184 : vector<2x24xf32>
    %186 = math.exp %185 : vector<2x24xf32>
    %cst_26 = arith.constant 1.000000e+00 : f32
    %187 = vector.broadcast %cst_26 : f32 to vector<2x24xf32>
    %188 = arith.addf %187, %186 : vector<2x24xf32>
    %189 = arith.divf %187, %188 : vector<2x24xf32>
    %190 = vector.extract_strided_slice %189 {offsets = [0, 0], sizes = [2, 6], strides = [1, 1]} : vector<2x24xf32> to vector<2x6xf32>
    %191 = vector.extract_strided_slice %189 {offsets = [0, 6], sizes = [2, 6], strides = [1, 1]} : vector<2x24xf32> to vector<2x6xf32>
    %192 = vector.extract_strided_slice %189 {offsets = [0, 12], sizes = [2, 6], strides = [1, 1]} : vector<2x24xf32> to vector<2x6xf32>
    %cst_27 = arith.constant 2.000000e+00 : f32
    %193 = vector.broadcast %cst_27 : f32 to vector<2x6xf32>
    %194 = arith.mulf %193, %192 : vector<2x6xf32>
    %cst_28 = arith.constant 1.000000e+00 : f32
    %195 = vector.broadcast %cst_28 : f32 to vector<2x6xf32>
    %196 = arith.subf %194, %195 : vector<2x6xf32>
    %197 = vector.extract_strided_slice %189 {offsets = [0, 18], sizes = [2, 6], strides = [1, 1]} : vector<2x24xf32> to vector<2x6xf32>
    %198 = arith.mulf %191, %180 : vector<2x6xf32>
    %199 = arith.mulf %190, %196 : vector<2x6xf32>
    %200 = arith.addf %198, %199 : vector<2x6xf32>
    %201 = math.tanh %200 : vector<2x6xf32>
    %202 = arith.mulf %197, %201 : vector<2x6xf32>
    %cst_29 = arith.constant dense<0.000000e+00> : vector<2x24xf32>
    %203 = tpu.matmul %202, %2, %cst_29 {dimension_numbers = #tpu.dot_dimension_numbers<[1], [0], [0], [1], [0, 0, 1, 1], [], []>} : vector<2x6xf32>, vector<6x24xf32>, vector<2x24xf32> -> vector<2x24xf32>
    %204 = arith.addf %45, %203 : vector<2x24xf32>
    %205 = arith.negf %204 : vector<2x24xf32>
    %206 = math.exp %205 : vector<2x24xf32>
    %cst_30 = arith.constant 1.000000e+00 : f32
    %207 = vector.broadcast %cst_30 : f32 to vector<2x24xf32>
    %208 = arith.addf %207, %206 : vector<2x24xf32>
    %209 = arith.divf %207, %208 : vector<2x24xf32>
    %210 = vector.extract_strided_slice %209 {offsets = [0, 0], sizes = [2, 6], strides = [1, 1]} : vector<2x24xf32> to vector<2x6xf32>
    %211 = vector.extract_strided_slice %209 {offsets = [0, 6], sizes = [2, 6], strides = [1, 1]} : vector<2x24xf32> to vector<2x6xf32>
    %212 = vector.extract_strided_slice %209 {offsets = [0, 12], sizes = [2, 6], strides = [1, 1]} : vector<2x24xf32> to vector<2x6xf32>
    %cst_31 = arith.constant 2.000000e+00 : f32
    %213 = vector.broadcast %cst_31 : f32 to vector<2x6xf32>
    %214 = arith.mulf %213, %212 : vector<2x6xf32>
    %cst_32 = arith.constant 1.000000e+00 : f32
    %215 = vector.broadcast %cst_32 : f32 to vector<2x6xf32>
    %216 = arith.subf %214, %215 : vector<2x6xf32>
    %217 = vector.extract_strided_slice %209 {offsets = [0, 18], sizes = [2, 6], strides = [1, 1]} : vector<2x24xf32> to vector<2x6xf32>
    %218 = arith.mulf %211, %200 : vector<2x6xf32>
    %219 = arith.mulf %210, %216 : vector<2x6xf32>
    %220 = arith.addf %218, %219 : vector<2x6xf32>
    %221 = math.tanh %220 : vector<2x6xf32>
    %222 = arith.mulf %217, %221 : vector<2x6xf32>
    %cst_33 = arith.constant dense<0.000000e+00> : vector<2x24xf32>
    %223 = tpu.matmul %222, %2, %cst_33 {dimension_numbers = #tpu.dot_dimension_numbers<[1], [0], [0], [1], [0, 0, 1, 1], [], []>} : vector<2x6xf32>, vector<6x24xf32>, vector<2x24xf32> -> vector<2x24xf32>
    %224 = arith.addf %51, %223 : vector<2x24xf32>
    %225 = arith.negf %224 : vector<2x24xf32>
    %226 = math.exp %225 : vector<2x24xf32>
    %cst_34 = arith.constant 1.000000e+00 : f32
    %227 = vector.broadcast %cst_34 : f32 to vector<2x24xf32>
    %228 = arith.addf %227, %226 : vector<2x24xf32>
    %229 = arith.divf %227, %228 : vector<2x24xf32>
    %230 = vector.extract_strided_slice %229 {offsets = [0, 0], sizes = [2, 6], strides = [1, 1]} : vector<2x24xf32> to vector<2x6xf32>
    %231 = vector.extract_strided_slice %229 {offsets = [0, 6], sizes = [2, 6], strides = [1, 1]} : vector<2x24xf32> to vector<2x6xf32>
    %232 = vector.extract_strided_slice %229 {offsets = [0, 12], sizes = [2, 6], strides = [1, 1]} : vector<2x24xf32> to vector<2x6xf32>
    %cst_35 = arith.constant 2.000000e+00 : f32
    %233 = vector.broadcast %cst_35 : f32 to vector<2x6xf32>
    %234 = arith.mulf %233, %232 : vector<2x6xf32>
    %cst_36 = arith.constant 1.000000e+00 : f32
    %235 = vector.broadcast %cst_36 : f32 to vector<2x6xf32>
    %236 = arith.subf %234, %235 : vector<2x6xf32>
    %237 = vector.extract_strided_slice %229 {offsets = [0, 18], sizes = [2, 6], strides = [1, 1]} : vector<2x24xf32> to vector<2x6xf32>
    %238 = arith.mulf %231, %220 : vector<2x6xf32>
    %239 = arith.mulf %230, %236 : vector<2x6xf32>
    %240 = arith.addf %238, %239 : vector<2x6xf32>
    %241 = math.tanh %240 : vector<2x6xf32>
    %242 = arith.mulf %237, %241 : vector<2x6xf32>
    %cst_37 = arith.constant dense<0.000000e+00> : vector<2x24xf32>
    %243 = tpu.matmul %242, %2, %cst_37 {dimension_numbers = #tpu.dot_dimension_numbers<[1], [0], [0], [1], [0, 0, 1, 1], [], []>} : vector<2x6xf32>, vector<6x24xf32>, vector<2x24xf32> -> vector<2x24xf32>
    %244 = arith.addf %57, %243 : vector<2x24xf32>
    %245 = arith.negf %244 : vector<2x24xf32>
    %246 = math.exp %245 : vector<2x24xf32>
    %cst_38 = arith.constant 1.000000e+00 : f32
    %247 = vector.broadcast %cst_38 : f32 to vector<2x24xf32>
    %248 = arith.addf %247, %246 : vector<2x24xf32>
    %249 = arith.divf %247, %248 : vector<2x24xf32>
    %250 = vector.extract_strided_slice %249 {offsets = [0, 0], sizes = [2, 6], strides = [1, 1]} : vector<2x24xf32> to vector<2x6xf32>
    %251 = vector.extract_strided_slice %249 {offsets = [0, 6], sizes = [2, 6], strides = [1, 1]} : vector<2x24xf32> to vector<2x6xf32>
    %252 = vector.extract_strided_slice %249 {offsets = [0, 12], sizes = [2, 6], strides = [1, 1]} : vector<2x24xf32> to vector<2x6xf32>
    %cst_39 = arith.constant 2.000000e+00 : f32
    %253 = vector.broadcast %cst_39 : f32 to vector<2x6xf32>
    %254 = arith.mulf %253, %252 : vector<2x6xf32>
    %cst_40 = arith.constant 1.000000e+00 : f32
    %255 = vector.broadcast %cst_40 : f32 to vector<2x6xf32>
    %256 = arith.subf %254, %255 : vector<2x6xf32>
    %257 = vector.extract_strided_slice %249 {offsets = [0, 18], sizes = [2, 6], strides = [1, 1]} : vector<2x24xf32> to vector<2x6xf32>
    %258 = arith.mulf %251, %240 : vector<2x6xf32>
    %259 = arith.mulf %250, %256 : vector<2x6xf32>
    %260 = arith.addf %258, %259 : vector<2x6xf32>
    %261 = math.tanh %260 : vector<2x6xf32>
    %262 = arith.mulf %257, %261 : vector<2x6xf32>
    %cst_41 = arith.constant dense<0.000000e+00> : vector<2x24xf32>
    %263 = tpu.matmul %262, %2, %cst_41 {dimension_numbers = #tpu.dot_dimension_numbers<[1], [0], [0], [1], [0, 0, 1, 1], [], []>} : vector<2x6xf32>, vector<6x24xf32>, vector<2x24xf32> -> vector<2x24xf32>
    %264 = arith.addf %63, %263 : vector<2x24xf32>
    %265 = arith.negf %264 : vector<2x24xf32>
    %266 = math.exp %265 : vector<2x24xf32>
    %cst_42 = arith.constant 1.000000e+00 : f32
    %267 = vector.broadcast %cst_42 : f32 to vector<2x24xf32>
    %268 = arith.addf %267, %266 : vector<2x24xf32>
    %269 = arith.divf %267, %268 : vector<2x24xf32>
    %270 = vector.extract_strided_slice %269 {offsets = [0, 0], sizes = [2, 6], strides = [1, 1]} : vector<2x24xf32> to vector<2x6xf32>
    %271 = vector.extract_strided_slice %269 {offsets = [0, 6], sizes = [2, 6], strides = [1, 1]} : vector<2x24xf32> to vector<2x6xf32>
    %272 = vector.extract_strided_slice %269 {offsets = [0, 12], sizes = [2, 6], strides = [1, 1]} : vector<2x24xf32> to vector<2x6xf32>
    %cst_43 = arith.constant 2.000000e+00 : f32
    %273 = vector.broadcast %cst_43 : f32 to vector<2x6xf32>
    %274 = arith.mulf %273, %272 : vector<2x6xf32>
    %cst_44 = arith.constant 1.000000e+00 : f32
    %275 = vector.broadcast %cst_44 : f32 to vector<2x6xf32>
    %276 = arith.subf %274, %275 : vector<2x6xf32>
    %277 = vector.extract_strided_slice %269 {offsets = [0, 18], sizes = [2, 6], strides = [1, 1]} : vector<2x24xf32> to vector<2x6xf32>
    %278 = arith.mulf %271, %260 : vector<2x6xf32>
    %279 = arith.mulf %270, %276 : vector<2x6xf32>
    %280 = arith.addf %278, %279 : vector<2x6xf32>
    %281 = math.tanh %280 : vector<2x6xf32>
    %282 = arith.mulf %277, %281 : vector<2x6xf32>
    %cst_45 = arith.constant dense<0.000000e+00> : vector<2x24xf32>
    %283 = tpu.matmul %282, %2, %cst_45 {dimension_numbers = #tpu.dot_dimension_numbers<[1], [0], [0], [1], [0, 0, 1, 1], [], []>} : vector<2x6xf32>, vector<6x24xf32>, vector<2x24xf32> -> vector<2x24xf32>
    %284 = arith.addf %69, %283 : vector<2x24xf32>
    %285 = arith.negf %284 : vector<2x24xf32>
    %286 = math.exp %285 : vector<2x24xf32>
    %cst_46 = arith.constant 1.000000e+00 : f32
    %287 = vector.broadcast %cst_46 : f32 to vector<2x24xf32>
    %288 = arith.addf %287, %286 : vector<2x24xf32>
    %289 = arith.divf %287, %288 : vector<2x24xf32>
    %290 = vector.extract_strided_slice %289 {offsets = [0, 0], sizes = [2, 6], strides = [1, 1]} : vector<2x24xf32> to vector<2x6xf32>
    %291 = vector.extract_strided_slice %289 {offsets = [0, 6], sizes = [2, 6], strides = [1, 1]} : vector<2x24xf32> to vector<2x6xf32>
    %292 = vector.extract_strided_slice %289 {offsets = [0, 12], sizes = [2, 6], strides = [1, 1]} : vector<2x24xf32> to vector<2x6xf32>
    %cst_47 = arith.constant 2.000000e+00 : f32
    %293 = vector.broadcast %cst_47 : f32 to vector<2x6xf32>
    %294 = arith.mulf %293, %292 : vector<2x6xf32>
    %cst_48 = arith.constant 1.000000e+00 : f32
    %295 = vector.broadcast %cst_48 : f32 to vector<2x6xf32>
    %296 = arith.subf %294, %295 : vector<2x6xf32>
    %297 = vector.extract_strided_slice %289 {offsets = [0, 18], sizes = [2, 6], strides = [1, 1]} : vector<2x24xf32> to vector<2x6xf32>
    %298 = arith.mulf %291, %280 : vector<2x6xf32>
    %299 = arith.mulf %290, %296 : vector<2x6xf32>
    %300 = arith.addf %298, %299 : vector<2x6xf32>
    %301 = math.tanh %300 : vector<2x6xf32>
    %302 = arith.mulf %297, %301 : vector<2x6xf32>
    %cst_49 = arith.constant dense<0.000000e+00> : vector<2x24xf32>
    %303 = tpu.matmul %302, %2, %cst_49 {dimension_numbers = #tpu.dot_dimension_numbers<[1], [0], [0], [1], [0, 0, 1, 1], [], []>} : vector<2x6xf32>, vector<6x24xf32>, vector<2x24xf32> -> vector<2x24xf32>
    %304 = arith.addf %75, %303 : vector<2x24xf32>
    %305 = arith.negf %304 : vector<2x24xf32>
    %306 = math.exp %305 : vector<2x24xf32>
    %cst_50 = arith.constant 1.000000e+00 : f32
    %307 = vector.broadcast %cst_50 : f32 to vector<2x24xf32>
    %308 = arith.addf %307, %306 : vector<2x24xf32>
    %309 = arith.divf %307, %308 : vector<2x24xf32>
    %310 = vector.extract_strided_slice %309 {offsets = [0, 0], sizes = [2, 6], strides = [1, 1]} : vector<2x24xf32> to vector<2x6xf32>
    %311 = vector.extract_strided_slice %309 {offsets = [0, 6], sizes = [2, 6], strides = [1, 1]} : vector<2x24xf32> to vector<2x6xf32>
    %312 = vector.extract_strided_slice %309 {offsets = [0, 12], sizes = [2, 6], strides = [1, 1]} : vector<2x24xf32> to vector<2x6xf32>
    %cst_51 = arith.constant 2.000000e+00 : f32
    %313 = vector.broadcast %cst_51 : f32 to vector<2x6xf32>
    %314 = arith.mulf %313, %312 : vector<2x6xf32>
    %cst_52 = arith.constant 1.000000e+00 : f32
    %315 = vector.broadcast %cst_52 : f32 to vector<2x6xf32>
    %316 = arith.subf %314, %315 : vector<2x6xf32>
    %317 = vector.extract_strided_slice %309 {offsets = [0, 18], sizes = [2, 6], strides = [1, 1]} : vector<2x24xf32> to vector<2x6xf32>
    %318 = arith.mulf %311, %300 : vector<2x6xf32>
    %319 = arith.mulf %310, %316 : vector<2x6xf32>
    %320 = arith.addf %318, %319 : vector<2x6xf32>
    %321 = math.tanh %320 : vector<2x6xf32>
    %322 = arith.mulf %317, %321 : vector<2x6xf32>
    %cst_53 = arith.constant dense<0.000000e+00> : vector<2x24xf32>
    %323 = tpu.matmul %322, %2, %cst_53 {dimension_numbers = #tpu.dot_dimension_numbers<[1], [0], [0], [1], [0, 0, 1, 1], [], []>} : vector<2x6xf32>, vector<6x24xf32>, vector<2x24xf32> -> vector<2x24xf32>
    %324 = arith.addf %81, %323 : vector<2x24xf32>
    %325 = arith.negf %324 : vector<2x24xf32>
    %326 = math.exp %325 : vector<2x24xf32>
    %cst_54 = arith.constant 1.000000e+00 : f32
    %327 = vector.broadcast %cst_54 : f32 to vector<2x24xf32>
    %328 = arith.addf %327, %326 : vector<2x24xf32>
    %329 = arith.divf %327, %328 : vector<2x24xf32>
    %330 = vector.extract_strided_slice %329 {offsets = [0, 0], sizes = [2, 6], strides = [1, 1]} : vector<2x24xf32> to vector<2x6xf32>
    %331 = vector.extract_strided_slice %329 {offsets = [0, 6], sizes = [2, 6], strides = [1, 1]} : vector<2x24xf32> to vector<2x6xf32>
    %332 = vector.extract_strided_slice %329 {offsets = [0, 12], sizes = [2, 6], strides = [1, 1]} : vector<2x24xf32> to vector<2x6xf32>
    %cst_55 = arith.constant 2.000000e+00 : f32
    %333 = vector.broadcast %cst_55 : f32 to vector<2x6xf32>
    %334 = arith.mulf %333, %332 : vector<2x6xf32>
    %cst_56 = arith.constant 1.000000e+00 : f32
    %335 = vector.broadcast %cst_56 : f32 to vector<2x6xf32>
    %336 = arith.subf %334, %335 : vector<2x6xf32>
    %337 = vector.extract_strided_slice %329 {offsets = [0, 18], sizes = [2, 6], strides = [1, 1]} : vector<2x24xf32> to vector<2x6xf32>
    %338 = arith.mulf %331, %320 : vector<2x6xf32>
    %339 = arith.mulf %330, %336 : vector<2x6xf32>
    %340 = arith.addf %338, %339 : vector<2x6xf32>
    %341 = math.tanh %340 : vector<2x6xf32>
    %342 = arith.mulf %337, %341 : vector<2x6xf32>
    %cst_57 = arith.constant dense<0.000000e+00> : vector<2x24xf32>
    %343 = tpu.matmul %342, %2, %cst_57 {dimension_numbers = #tpu.dot_dimension_numbers<[1], [0], [0], [1], [0, 0, 1, 1], [], []>} : vector<2x6xf32>, vector<6x24xf32>, vector<2x24xf32> -> vector<2x24xf32>
    %344 = arith.addf %87, %343 : vector<2x24xf32>
    %345 = arith.negf %344 : vector<2x24xf32>
    %346 = math.exp %345 : vector<2x24xf32>
    %cst_58 = arith.constant 1.000000e+00 : f32
    %347 = vector.broadcast %cst_58 : f32 to vector<2x24xf32>
    %348 = arith.addf %347, %346 : vector<2x24xf32>
    %349 = arith.divf %347, %348 : vector<2x24xf32>
    %350 = vector.extract_strided_slice %349 {offsets = [0, 0], sizes = [2, 6], strides = [1, 1]} : vector<2x24xf32> to vector<2x6xf32>
    %351 = vector.extract_strided_slice %349 {offsets = [0, 6], sizes = [2, 6], strides = [1, 1]} : vector<2x24xf32> to vector<2x6xf32>
    %352 = vector.extract_strided_slice %349 {offsets = [0, 12], sizes = [2, 6], strides = [1, 1]} : vector<2x24xf32> to vector<2x6xf32>
    %cst_59 = arith.constant 2.000000e+00 : f32
    %353 = vector.broadcast %cst_59 : f32 to vector<2x6xf32>
    %354 = arith.mulf %353, %352 : vector<2x6xf32>
    %cst_60 = arith.constant 1.000000e+00 : f32
    %355 = vector.broadcast %cst_60 : f32 to vector<2x6xf32>
    %356 = arith.subf %354, %355 : vector<2x6xf32>
    %357 = vector.extract_strided_slice %349 {offsets = [0, 18], sizes = [2, 6], strides = [1, 1]} : vector<2x24xf32> to vector<2x6xf32>
    %358 = arith.mulf %351, %340 : vector<2x6xf32>
    %359 = arith.mulf %350, %356 : vector<2x6xf32>
    %360 = arith.addf %358, %359 : vector<2x6xf32>
    %361 = math.tanh %360 : vector<2x6xf32>
    %362 = arith.mulf %357, %361 : vector<2x6xf32>
    %c0_61 = arith.constant 0 : index
    %c0_62 = arith.constant 0 : index
    %363 = vector.load %arg4[%c0_61, %c0_62] : memref<1x6xf32, #tpu.memory_space<vmem>>, vector<1x6xf32>
    %364 = vector.shape_cast %362 : vector<2x6xf32> to vector<2x1x6xf32>
    %365 = vector.shape_cast %363 : vector<1x6xf32> to vector<1x1x6xf32>
    %366 = vector.broadcast %365 : vector<1x1x6xf32> to vector<2x1x6xf32>
    %367 = arith.mulf %364, %366 : vector<2x1x6xf32>
    %cst_63 = arith.constant dense<0.000000e+00> : vector<2x1xf32>
    %368 = vector.multi_reduction <add>, %367, %cst_63 [2] : vector<2x1x6xf32> to vector<2x1xf32>
    %c0_64 = arith.constant 0 : index
    %c0_65 = arith.constant 0 : index
    %369 = vector.load %arg5[%c0_64, %c0_65] : memref<1x1xf32, #tpu.memory_space<vmem>>, vector<1x1xf32>
    %370 = vector.broadcast %369 : vector<1x1xf32> to vector<2x1xf32>
    %371 = arith.addf %368, %370 : vector<2x1xf32>
    %c0_66 = arith.constant 0 : index
    %c0_67 = arith.constant 0 : index
    %372 = vector.load %arg6[%c0_66, %c0_67] : memref<2x1xf32, #tpu.memory_space<vmem>>, vector<2x1xf32>
    tpu.vector_store %arg6[%c0_66, %c0_67], %371 {strides = array<i32>} : memref<2x1xf32, #tpu.memory_space<vmem>>, vector<2x1xf32>,
    return
  }
}

</mosaic_0001>

<llo_original>
// kernel: lstm_forward.1
$region0: #{lstm_forward.1}
  #allocation0 [shape = 'u32[]', space=smem, size = 0x4, offset = 0x4, fixed_abs, tag = 'smem constant byte address 0x4 - core index']
  #allocation1 [shape = 'u32[144,128]{1,0:T(1,128)}', space=vmem, size = 0x12000, scoped, tag = 'internal scratch']
  #allocation2 [shape = 'f32[1,1]{1,0:T(1,128)S(1)}', space=vmem, size = 0x200, scoped, tag = 'scoped memory for lstm_forward.1']
  %s0 = inlined_call_operand.vmem [shape: f32[2,14], index: 0, kind: input, shape index: {}]
  %s1 = inlined_call_operand.vmem [shape: f32[1,24], index: 1, kind: input, shape index: {}]
  %s2 = inlined_call_operand.vmem [shape: f32[6,24], index: 2, kind: input, shape index: {}]
  %s3 = inlined_call_operand.vmem [shape: f32[1,24], index: 3, kind: input, shape index: {}]
  %s4 = inlined_call_operand.vmem [shape: f32[1,6], index: 4, kind: input, shape index: {}]
  %s5 = inlined_call_operand.<no memory space> [shape: f32[1,1], index: 5, kind: input, shape index: {}]
  %s6 = inlined_call_operand.vmem [shape: f32[2,1], index: 6, kind: output, shape index: {}]
  %s7 = sld [smem:[#allocation0]]
  $region34: #{lstm_forward.1} parent=0
    _
  %s9 = ssub.s32 1, %s7
  %s10 = scalar_select 0, %s9, %s7
  %v11 = vstv %s5
  %12 = vst [vmem:[#allocation2] sm:$0x1] %v11
  // Predicated region
  $region2: #{lstm_forward.1} parent=0 // pred_check
    _
  $region3: #{lstm_forward.1} parent=0 // pred_check_branch
    %14 = sbr.rel (0) target = $region5
  $region4: #{lstm_forward.1} parent=0 // pred_region
    _
  $region5: #{lstm_forward.1} parent=0 // pred_fallthru
    _
  // Predicated region
  $region6: #{lstm_forward.1} parent=0 // pred_check
    _
  $region7: #{lstm_forward.1} parent=0 // pred_check_branch
    %16 = sbr.rel (0) target = $region9
  $region8: #{lstm_forward.1} parent=0 // pred_region
    _
  $region9: #{lstm_forward.1} parent=0 // pred_fallthru
    _
  // Predicated region
  $region10: #{lstm_forward.1} parent=0 // pred_check
    _
  $region11: #{lstm_forward.1} parent=0 // pred_check_branch
    %18 = sbr.rel (0) target = $region13
  $region12: #{lstm_forward.1} parent=0 // pred_region
    _
  $region13: #{lstm_forward.1} parent=0 // pred_fallthru
    _
  // Predicated region
  $region14: #{lstm_forward.1} parent=0 // pred_check
    _
  $region15: #{lstm_forward.1} parent=0 // pred_check_branch
    %20 = sbr.rel (0) target = $region17
  $region16: #{lstm_forward.1} parent=0 // pred_region
    _
  $region17: #{lstm_forward.1} parent=0 // pred_fallthru
    _
  // Predicated region
  $region18: #{lstm_forward.1} parent=0 // pred_check
    _
  $region19: #{lstm_forward.1} parent=0 // pred_check_branch
    %22 = sbr.rel (0) target = $region21
  $region20: #{lstm_forward.1} parent=0 // pred_region
    _
  $region21: #{lstm_forward.1} parent=0 // pred_fallthru
    _
  // Predicated region
  $region22: #{lstm_forward.1} parent=0 // pred_check
    _
  $region23: #{lstm_forward.1} parent=0 // pred_check_branch
    %24 = sbr.rel (0) target = $region25
  $region24: #{lstm_forward.1} parent=0 // pred_region
    _
  $region25: #{lstm_forward.1} parent=0 // pred_fallthru
    _
  %v25 = vld [vmem:[%s0] sm:$0x3]
  %v26 = vld [vmem:[%s1] sm:$0x1]
  %v27 = vld [vmem:[%s2] sm:$0x3f]
  %v28 = vld [vmem:[%s3] sm:$0x1]
  %30 = vset.pattern.permute.xlu0 0
  %31 = vperm.xlu0 %30, %v25
  %v32 = vpop.permute.xlu0 %31
  %v35 = vlaneseq
  %v36 = vshrl.u32 %v35, 7
  %v37 = vsub.s32 0, %v36
  %v38 = vrot.slane %v26, %v37
  %v40 = vmul.f32 %v32, %v38
  %v42 = vlaneseq
  %v43 = vshrl.u32 %v42, 7
  %v44 = vsub.s32 0, %v43
  %v45 = vrot.slane %v28, %v44
  %v47 = vadd.f32 %v45, %v40
  %48 = vset.pattern.permute.xlu0 1
  %49 = vperm.xlu0 %48, %v25
  %v50 = vpop.permute.xlu0 %49
  %v52 = vmul.f32 %v50, %v38
  %v53 = vadd.f32 %v45, %v52
  %54 = vset.pattern.permute.xlu0 2
  %55 = vperm.xlu0 %54, %v25
  %v56 = vpop.permute.xlu0 %55
  %v58 = vmul.f32 %v56, %v38
  %v59 = vadd.f32 %v45, %v58
  %60 = vset.pattern.permute.xlu0 3
  %61 = vperm.xlu0 %60, %v25
  %v62 = vpop.permute.xlu0 %61
  %v64 = vmul.f32 %v62, %v38
  %v65 = vadd.f32 %v45, %v64
  %66 = vset.pattern.permute.xlu0 4
  %67 = vperm.xlu0 %66, %v25
  %v68 = vpop.permute.xlu0 %67
  %v70 = vmul.f32 %v68, %v38
  %v71 = vadd.f32 %v45, %v70
  %72 = vset.pattern.permute.xlu0 5
  %73 = vperm.xlu0 %72, %v25
  %v74 = vpop.permute.xlu0 %73
  %v76 = vmul.f32 %v74, %v38
  %v77 = vadd.f32 %v45, %v76
  %78 = vset.pattern.permute.xlu0 6
  %79 = vperm.xlu0 %78, %v25
  %v80 = vpop.permute.xlu0 %79
  %v82 = vmul.f32 %v80, %v38
  %v83 = vadd.f32 %v45, %v82
  %84 = vset.pattern.permute.xlu0 7
  %85 = vperm.xlu0 %84, %v25
  %v86 = vpop.permute.xlu0 %85
  %v88 = vmul.f32 %v86, %v38
  %v89 = vadd.f32 %v45, %v88
  %90 = vset.pattern.permute.xlu0 8
  %91 = vperm.xlu0 %90, %v25
  %v92 = vpop.permute.xlu0 %91
  %v94 = vmul.f32 %v92, %v38
  %v95 = vadd.f32 %v45, %v94
  %96 = vset.pattern.permute.xlu0 9
  %97 = vperm.xlu0 %96, %v25
  %v98 = vpop.permute.xlu0 %97
  %v100 = vmul.f32 %v98, %v38
  %v101 = vadd.f32 %v45, %v100
  %102 = vset.pattern.permute.xlu0 10
  %103 = vperm.xlu0 %102, %v25
  %v104 = vpop.permute.xlu0 %103
  %v106 = vmul.f32 %v104, %v38
  %v107 = vadd.f32 %v45, %v106
  %108 = vset.pattern.permute.xlu0 11
  %109 = vperm.xlu0 %108, %v25
  %v110 = vpop.permute.xlu0 %109
  %v112 = vmul.f32 %v110, %v38
  %v113 = vadd.f32 %v45, %v112
  %114 = vset.pattern.permute.xlu0 12
  %115 = vperm.xlu0 %114, %v25
  %v116 = vpop.permute.xlu0 %115
  %v118 = vmul.f32 %v116, %v38
  %v119 = vadd.f32 %v45, %v118
  %120 = vset.pattern.permute.xlu0 13
  %121 = vperm.xlu0 %120, %v25
  %v122 = vpop.permute.xlu0 %121
  %v124 = vmul.f32 %v122, %v38
  %v125 = vadd.f32 %v45, %v124
  %v126 = vxor.u32 %v47, 2147483648
  %v127 = vmul.f32 %v126, 1.442695
  %v128 = vpow.pop %v127
  %v129 = vadd.f32 %v128, 1.0
  %v130 = vrcp.pop %v129
  %v131 = vmul.f32 1.0, %v130
  %v132 = vmul.f32 %v131, 2.0
  %v133 = vsub.f32 %v132, 1.0
  %135 = vrot.lane.b32.xlu0 %v133, 116
  %v136 = vpop.permute.xlu0 %135
  %v138 = vmul.f32 %v131, %v136
  %v139 = vtanh.pop %v138
  %141 = vrot.lane.b32.xlu0 %v139, 18
  %v142 = vpop.permute.xlu0 %141
  %v144 = vmul.f32 %v131, %v142
  %146 = vrot.lane.b32.xlu0 %v144, 110
  %v147 = vpop.permute.xlu0 %146
  %vm148 = vcmask 48128
  %v149 = vsel %vm148, %v147, 0
  %vm151 = vcmask 1045504
  %v153 = vsel %vm151, %v27, 0
  %155 = vmatprep.subr.mxu0 0.0
  %156 = vmatpush1.msra.mxu0 %v153
  %157 = vmatprep.subr.mxu0 0.0
  %158 = vmatpush1.msra.mxu0 0.0
  %159 = vmatprep.subr.mxu0 0.0
  %160 = vmatpush1.msra.mxu0 0.0
  %161 = vmatprep.subr.mxu0 0.0
  %162 = vmatpush1.msra.mxu0 0.0
  %163 = vmatprep.subr.mxu0 0.0
  %164 = vmatpush1.msra.mxu0 0.0
  %165 = vmatprep.subr.mxu0 0.0
  %166 = vmatpush1.msra.mxu0 0.0
  %167 = vmatprep.subr.mxu0 0.0
  %168 = vmatpush1.msra.mxu0 0.0
  %169 = vmatprep.subr.mxu0 0.0
  %170 = vmatpush1.msra.mxu0 0.0
  %171 = vmatprep.subr.mxu0 0.0
  %172 = vmatpush1.msra.mxu0 0.0
  %173 = vmatprep.subr.mxu0 0.0
  %174 = vmatpush1.msra.mxu0 0.0
  %175 = vmatprep.subr.mxu0 0.0
  %176 = vmatpush1.msra.mxu0 0.0
  %177 = vmatprep.subr.mxu0 0.0
  %178 = vmatpush1.msra.mxu0 0.0
  %179 = vmatprep.subr.mxu0 0.0
  %180 = vmatpush1.msra.mxu0 0.0
  %181 = vmatprep.subr.mxu0 0.0
  %182 = vmatpush1.msra.mxu0 0.0
  %183 = vmatprep.subr.mxu0 0.0
  %184 = vmatpush1.msra.mxu0 0.0
  %185 = vmatprep.subr.mxu0 0.0
  %186 = vmatpush1.msra.mxu0 0.0
  %187 = vmatprep.subr.mxu0 0.0
  %188 = vmatpush1.msra.mxu0 0.0
  %189 = vmatprep.subr.mxu0 0.0
  %190 = vmatpush1.msra.mxu0 0.0
  %191 = vmatprep.subr.mxu0 0.0
  %192 = vmatpush1.msra.mxu0 0.0
  %193 = vmatprep.subr.mxu0 0.0
  %194 = vmatpush1.msra.mxu0 0.0
  %195 = vmatprep.subr.mxu0 0.0
  %196 = vmatpush1.msra.mxu0 0.0
  %197 = vmatprep.subr.mxu0 0.0
  %198 = vmatpush1.msra.mxu0 0.0
  %199 = vmatprep.subr.mxu0 0.0
  %200 = vmatpush1.msra.mxu0 0.0
  %201 = vmatprep.subr.mxu0 0.0
  %202 = vmatpush1.msra.mxu0 0.0
  %203 = vmatprep.subr.mxu0 0.0
  %204 = vmatpush1.msra.mxu0 0.0
  %205 = vmatprep.subr.mxu0 0.0
  %206 = vmatpush1.msra.mxu0 0.0
  %207 = vmatprep.subr.mxu0 0.0
  %208 = vmatpush1.msra.mxu0 0.0
  %209 = vmatprep.subr.mxu0 0.0
  %210 = vmatpush1.msra.mxu0 0.0
  %211 = vmatprep.subr.mxu0 0.0
  %212 = vmatpush1.msra.mxu0 0.0
  %213 = vmatprep.subr.mxu0 0.0
  %214 = vmatpush1.msra.mxu0 0.0
  %215 = vmatprep.subr.mxu0 0.0
  %216 = vmatpush1.msra.mxu0 0.0
  %217 = vmatprep.subr.mxu0 0.0
  %218 = vmatpush1.msra.mxu0 0.0
  %219 = vmatprep.mubr.f32.mxu0 0.0
  %220 = vmatmul.mubr.f32.gmra.mrb[0].mxu0 %v149
  %v221 = vpop.f32.mrb[0].mxu0
  %v222 = vadd.f32 0.0, %v221
  %v223 = vpop.f32.mrb[0].mxu0
  %224 = vdwg.mxu0
  %v225 = vadd.f32 %v53, %v222
  %v226 = vxor.u32 %v225, 2147483648
  %v227 = vmul.f32 %v226, 1.442695
  %v228 = vpow.pop %v227
  %v229 = vadd.f32 %v228, 1.0
  %v230 = vrcp.pop %v229
  %v231 = vmul.f32 1.0, %v230
  %v232 = vmul.f32 %v231, 2.0
  %v233 = vsub.f32 %v232, 1.0
  %235 = vrot.lane.b32.xlu0 %v138, 6
  %v236 = vpop.permute.xlu0 %235
  %v238 = vmul.f32 %v231, %v236
  %240 = vrot.lane.b32.xlu0 %v233, 116
  %v241 = vpop.permute.xlu0 %240
  %v243 = vmul.f32 %v231, %v241
  %245 = vrot.lane.b32.xlu0 %v243, 6
  %v246 = vpop.permute.xlu0 %245
  %v248 = vadd.f32 %v238, %v246
  %v249 = vtanh.pop %v248
  %251 = vrot.lane.b32.xlu0 %v249, 12
  %v252 = vpop.permute.xlu0 %251
  %v254 = vmul.f32 %v231, %v252
  %256 = vrot.lane.b32.xlu0 %v254, 110
  %v257 = vpop.permute.xlu0 %256
  %v258 = vsel %vm148, %v257, 0
  %260 = vmatprep.subr.mxu0 0.0
  %261 = vmatpush1.msra.mxu0 %v153
  %262 = vmatprep.subr.mxu0 0.0
  %263 = vmatpush1.msra.mxu0 0.0
  %264 = vmatprep.subr.mxu0 0.0
  %265 = vmatpush1.msra.mxu0 0.0
  %266 = vmatprep.subr.mxu0 0.0
  %267 = vmatpush1.msra.mxu0 0.0
  %268 = vmatprep.subr.mxu0 0.0
  %269 = vmatpush1.msra.mxu0 0.0
  %270 = vmatprep.subr.mxu0 0.0
  %271 = vmatpush1.msra.mxu0 0.0
  %272 = vmatprep.subr.mxu0 0.0
  %273 = vmatpush1.msra.mxu0 0.0
  %274 = vmatprep.subr.mxu0 0.0
  %275 = vmatpush1.msra.mxu0 0.0
  %276 = vmatprep.subr.mxu0 0.0
  %277 = vmatpush1.msra.mxu0 0.0
  %278 = vmatprep.subr.mxu0 0.0
  %279 = vmatpush1.msra.mxu0 0.0
  %280 = vmatprep.subr.mxu0 0.0
  %281 = vmatpush1.msra.mxu0 0.0
  %282 = vmatprep.subr.mxu0 0.0
  %283 = vmatpush1.msra.mxu0 0.0
  %284 = vmatprep.subr.mxu0 0.0
  %285 = vmatpush1.msra.mxu0 0.0
  %286 = vmatprep.subr.mxu0 0.0
  %287 = vmatpush1.msra.mxu0 0.0
  %288 = vmatprep.subr.mxu0 0.0
  %289 = vmatpush1.msra.mxu0 0.0
  %290 = vmatprep.subr.mxu0 0.0
  %291 = vmatpush1.msra.mxu0 0.0
  %292 = vmatprep.subr.mxu0 0.0
  %293 = vmatpush1.msra.mxu0 0.0
  %294 = vmatprep.subr.mxu0 0.0
  %295 = vmatpush1.msra.mxu0 0.0
  %296 = vmatprep.subr.mxu0 0.0
  %297 = vmatpush1.msra.mxu0 0.0
  %298 = vmatprep.subr.mxu0 0.0
  %299 = vmatpush1.msra.mxu0 0.0
  %300 = vmatprep.subr.mxu0 0.0
  %301 = vmatpush1.msra.mxu0 0.0
  %302 = vmatprep.subr.mxu0 0.0
  %303 = vmatpush1.msra.mxu0 0.0
  %304 = vmatprep.subr.mxu0 0.0
  %305 = vmatpush1.msra.mxu0 0.0
  %306 = vmatprep.subr.mxu0 0.0
  %307 = vmatpush1.msra.mxu0 0.0
  %308 = vmatprep.subr.mxu0 0.0
  %309 = vmatpush1.msra.mxu0 0.0
  %310 = vmatprep.subr.mxu0 0.0
  %311 = vmatpush1.msra.mxu0 0.0
  %312 = vmatprep.subr.mxu0 0.0
  %313 = vmatpush1.msra.mxu0 0.0
  %314 = vmatprep.subr.mxu0 0.0
  %315 = vmatpush1.msra.mxu0 0.0
  %316 = vmatprep.subr.mxu0 0.0
  %317 = vmatpush1.msra.mxu0 0.0
  %318 = vmatprep.subr.mxu0 0.0
  %319 = vmatpush1.msra.mxu0 0.0
  %320 = vmatprep.subr.mxu0 0.0
  %321 = vmatpush1.msra.mxu0 0.0
  %322 = vmatprep.subr.mxu0 0.0
  %323 = vmatpush1.msra.mxu0 0.0
  %324 = vmatprep.mubr.f32.mxu0 0.0
  %325 = vmatmul.mubr.f32.gmra.mrb[0].mxu0 %v258
  %v326 = vpop.f32.mrb[0].mxu0
  %v327 = vadd.f32 0.0, %v326
  %v328 = vpop.f32.mrb[0].mxu0
  %329 = vdwg.mxu0
  %v330 = vadd.f32 %v59, %v327
  %v331 = vxor.u32 %v330, 2147483648
  %v332 = vmul.f32 %v331, 1.442695
  %v333 = vpow.pop %v332
  %v334 = vadd.f32 %v333, 1.0
  %v335 = vrcp.pop %v334
  %v336 = vmul.f32 1.0, %v335
  %v337 = vmul.f32 %v336, 2.0
  %v338 = vsub.f32 %v337, 1.0
  %v339 = vmul.f32 %v336, %v248
  %341 = vrot.lane.b32.xlu0 %v338, 116
  %v342 = vpop.permute.xlu0 %341
  %v344 = vmul.f32 %v336, %v342
  %346 = vrot.lane.b32.xlu0 %v344, 6
  %v347 = vpop.permute.xlu0 %346
  %v349 = vadd.f32 %v339, %v347
  %v350 = vtanh.pop %v349
  %352 = vrot.lane.b32.xlu0 %v350, 12
  %v353 = vpop.permute.xlu0 %352
  %v355 = vmul.f32 %v336, %v353
  %357 = vrot.lane.b32.xlu0 %v355, 110
  %v358 = vpop.permute.xlu0 %357
  %v359 = vsel %vm148, %v358, 0
  %361 = vmatprep.subr.mxu0 0.0
  %362 = vmatpush1.msra.mxu0 %v153
  %363 = vmatprep.subr.mxu0 0.0
  %364 = vmatpush1.msra.mxu0 0.0
  %365 = vmatprep.subr.mxu0 0.0
  %366 = vmatpush1.msra.mxu0 0.0
  %367 = vmatprep.subr.mxu0 0.0
  %368 = vmatpush1.msra.mxu0 0.0
  %369 = vmatprep.subr.mxu0 0.0
  %370 = vmatpush1.msra.mxu0 0.0
  %371 = vmatprep.subr.mxu0 0.0
  %372 = vmatpush1.msra.mxu0 0.0
  %373 = vmatprep.subr.mxu0 0.0
  %374 = vmatpush1.msra.mxu0 0.0
  %375 = vmatprep.subr.mxu0 0.0
  %376 = vmatpush1.msra.mxu0 0.0
  %377 = vmatprep.subr.mxu0 0.0
  %378 = vmatpush1.msra.mxu0 0.0
  %379 = vmatprep.subr.mxu0 0.0
  %380 = vmatpush1.msra.mxu0 0.0
  %381 = vmatprep.subr.mxu0 0.0
  %382 = vmatpush1.msra.mxu0 0.0
  %383 = vmatprep.subr.mxu0 0.0
  %384 = vmatpush1.msra.mxu0 0.0
  %385 = vmatprep.subr.mxu0 0.0
  %386 = vmatpush1.msra.mxu0 0.0
  %387 = vmatprep.subr.mxu0 0.0
  %388 = vmatpush1.msra.mxu0 0.0
  %389 = vmatprep.subr.mxu0 0.0
  %390 = vmatpush1.msra.mxu0 0.0
  %391 = vmatprep.subr.mxu0 0.0
  %392 = vmatpush1.msra.mxu0 0.0
  %393 = vmatprep.subr.mxu0 0.0
  %394 = vmatpush1.msra.mxu0 0.0
  %395 = vmatprep.subr.mxu0 0.0
  %396 = vmatpush1.msra.mxu0 0.0
  %397 = vmatprep.subr.mxu0 0.0
  %398 = vmatpush1.msra.mxu0 0.0
  %399 = vmatprep.subr.mxu0 0.0
  %400 = vmatpush1.msra.mxu0 0.0
  %401 = vmatprep.subr.mxu0 0.0
  %402 = vmatpush1.msra.mxu0 0.0
  %403 = vmatprep.subr.mxu0 0.0
  %404 = vmatpush1.msra.mxu0 0.0
  %405 = vmatprep.subr.mxu0 0.0
  %406 = vmatpush1.msra.mxu0 0.0
  %407 = vmatprep.subr.mxu0 0.0
  %408 = vmatpush1.msra.mxu0 0.0
  %409 = vmatprep.subr.mxu0 0.0
  %410 = vmatpush1.msra.mxu0 0.0
  %411 = vmatprep.subr.mxu0 0.0
  %412 = vmatpush1.msra.mxu0 0.0
  %413 = vmatprep.subr.mxu0 0.0
  %414 = vmatpush1.msra.mxu0 0.0
  %415 = vmatprep.subr.mxu0 0.0
  %416 = vmatpush1.msra.mxu0 0.0
  %417 = vmatprep.subr.mxu0 0.0
  %418 = vmatpush1.msra.mxu0 0.0
  %419 = vmatprep.subr.mxu0 0.0
  %420 = vmatpush1.msra.mxu0 0.0
  %421 = vmatprep.subr.mxu0 0.0
  %422 = vmatpush1.msra.mxu0 0.0
  %423 = vmatprep.subr.mxu0 0.0
  %424 = vmatpush1.msra.mxu0 0.0
  %425 = vmatprep.mubr.f32.mxu0 0.0
  %426 = vmatmul.mubr.f32.gmra.mrb[0].mxu0 %v359
  %v427 = vpop.f32.mrb[0].mxu0
  %v428 = vadd.f32 0.0, %v427
  %v429 = vpop.f32.mrb[0].mxu0
  %430 = vdwg.mxu0
  %v431 = vadd.f32 %v65, %v428
  %v432 = vxor.u32 %v431, 2147483648
  %v433 = vmul.f32 %v432, 1.442695
  %v434 = vpow.pop %v433
  %v435 = vadd.f32 %v434, 1.0
  %v436 = vrcp.pop %v435
  %v437 = vmul.f32 1.0, %v436
  %v438 = vmul.f32 %v437, 2.0
  %v439 = vsub.f32 %v438, 1.0
  %v440 = vmul.f32 %v437, %v349
  %442 = vrot.lane.b32.xlu0 %v439, 116
  %v443 = vpop.permute.xlu0 %442
  %v445 = vmul.f32 %v437, %v443
  %447 = vrot.lane.b32.xlu0 %v445, 6
  %v448 = vpop.permute.xlu0 %447
  %v450 = vadd.f32 %v440, %v448
  %v451 = vtanh.pop %v450
  %453 = vrot.lane.b32.xlu0 %v451, 12
  %v454 = vpop.permute.xlu0 %453
  %v456 = vmul.f32 %v437, %v454
  %458 = vrot.lane.b32.xlu0 %v456, 110
  %v459 = vpop.permute.xlu0 %458
  %v460 = vsel %vm148, %v459, 0
  %462 = vmatprep.subr.mxu0 0.0
  %463 = vmatpush1.msra.mxu0 %v153
  %464 = vmatprep.subr.mxu0 0.0
  %465 = vmatpush1.msra.mxu0 0.0
  %466 = vmatprep.subr.mxu0 0.0
  %467 = vmatpush1.msra.mxu0 0.0
  %468 = vmatprep.subr.mxu0 0.0
  %469 = vmatpush1.msra.mxu0 0.0
  %470 = vmatprep.subr.mxu0 0.0
  %471 = vmatpush1.msra.mxu0 0.0
  %472 = vmatprep.subr.mxu0 0.0
  %473 = vmatpush1.msra.mxu0 0.0
  %474 = vmatprep.subr.mxu0 0.0
  %475 = vmatpush1.msra.mxu0 0.0
  %476 = vmatprep.subr.mxu0 0.0
  %477 = vmatpush1.msra.mxu0 0.0
  %478 = vmatprep.subr.mxu0 0.0
  %479 = vmatpush1.msra.mxu0 0.0
  %480 = vmatprep.subr.mxu0 0.0
  %481 = vmatpush1.msra.mxu0 0.0
  %482 = vmatprep.subr.mxu0 0.0
  %483 = vmatpush1.msra.mxu0 0.0
  %484 = vmatprep.subr.mxu0 0.0
  %485 = vmatpush1.msra.mxu0 0.0
  %486 = vmatprep.subr.mxu0 0.0
  %487 = vmatpush1.msra.mxu0 0.0
  %488 = vmatprep.subr.mxu0 0.0
  %489 = vmatpush1.msra.mxu0 0.0
  %490 = vmatprep.subr.mxu0 0.0
  %491 = vmatpush1.msra.mxu0 0.0
  %492 = vmatprep.subr.mxu0 0.0
  %493 = vmatpush1.msra.mxu0 0.0
  %494 = vmatprep.subr.mxu0 0.0
  %495 = vmatpush1.msra.mxu0 0.0
  %496 = vmatprep.subr.mxu0 0.0
  %497 = vmatpush1.msra.mxu0 0.0
  %498 = vmatprep.subr.mxu0 0.0
  %499 = vmatpush1.msra.mxu0 0.0
  %500 = vmatprep.subr.mxu0 0.0
  %501 = vmatpush1.msra.mxu0 0.0
  %502 = vmatprep.subr.mxu0 0.0
  %503 = vmatpush1.msra.mxu0 0.0
  %504 = vmatprep.subr.mxu0 0.0
  %505 = vmatpush1.msra.mxu0 0.0
  %506 = vmatprep.subr.mxu0 0.0
  %507 = vmatpush1.msra.mxu0 0.0
  %508 = vmatprep.subr.mxu0 0.0
  %509 = vmatpush1.msra.mxu0 0.0
  %510 = vmatprep.subr.mxu0 0.0
  %511 = vmatpush1.msra.mxu0 0.0
  %512 = vmatprep.subr.mxu0 0.0
  %513 = vmatpush1.msra.mxu0 0.0
  %514 = vmatprep.subr.mxu0 0.0
  %515 = vmatpush1.msra.mxu0 0.0
  %516 = vmatprep.subr.mxu0 0.0
  %517 = vmatpush1.msra.mxu0 0.0
  %518 = vmatprep.subr.mxu0 0.0
  %519 = vmatpush1.msra.mxu0 0.0
  %520 = vmatprep.subr.mxu0 0.0
  %521 = vmatpush1.msra.mxu0 0.0
  %522 = vmatprep.subr.mxu0 0.0
  %523 = vmatpush1.msra.mxu0 0.0
  %524 = vmatprep.subr.mxu0 0.0
  %525 = vmatpush1.msra.mxu0 0.0
  %526 = vmatprep.mubr.f32.mxu0 0.0
  %527 = vmatmul.mubr.f32.gmra.mrb[0].mxu0 %v460
  %v528 = vpop.f32.mrb[0].mxu0
  %v529 = vadd.f32 0.0, %v528
  %v530 = vpop.f32.mrb[0].mxu0
  %531 = vdwg.mxu0
  %v532 = vadd.f32 %v71, %v529
  %v533 = vxor.u32 %v532, 2147483648
  %v534 = vmul.f32 %v533, 1.442695
  %v535 = vpow.pop %v534
  %v536 = vadd.f32 %v535, 1.0
  %v537 = vrcp.pop %v536
  %v538 = vmul.f32 1.0, %v537
  %v539 = vmul.f32 %v538, 2.0
  %v540 = vsub.f32 %v539, 1.0
  %v541 = vmul.f32 %v538, %v450
  %543 = vrot.lane.b32.xlu0 %v540, 116
  %v544 = vpop.permute.xlu0 %543
  %v546 = vmul.f32 %v538, %v544
  %548 = vrot.lane.b32.xlu0 %v546, 6
  %v549 = vpop.permute.xlu0 %548
  %v551 = vadd.f32 %v541, %v549
  %v552 = vtanh.pop %v551
  %554 = vrot.lane.b32.xlu0 %v552, 12
  %v555 = vpop.permute.xlu0 %554
  %v557 = vmul.f32 %v538, %v555
  %559 = vrot.lane.b32.xlu0 %v557, 110
  %v560 = vpop.permute.xlu0 %559
  %v561 = vsel %vm148, %v560, 0
  %563 = vmatprep.subr.mxu0 0.0
  %564 = vmatpush1.msra.mxu0 %v153
  %565 = vmatprep.subr.mxu0 0.0
  %566 = vmatpush1.msra.mxu0 0.0
  %567 = vmatprep.subr.mxu0 0.0
  %568 = vmatpush1.msra.mxu0 0.0
  %569 = vmatprep.subr.mxu0 0.0
  %570 = vmatpush1.msra.mxu0 0.0
  %571 = vmatprep.subr.mxu0 0.0
  %572 = vmatpush1.msra.mxu0 0.0
  %573 = vmatprep.subr.mxu0 0.0
  %574 = vmatpush1.msra.mxu0 0.0
  %575 = vmatprep.subr.mxu0 0.0
  %576 = vmatpush1.msra.mxu0 0.0
  %577 = vmatprep.subr.mxu0 0.0
  %578 = vmatpush1.msra.mxu0 0.0
  %579 = vmatprep.subr.mxu0 0.0
  %580 = vmatpush1.msra.mxu0 0.0
  %581 = vmatprep.subr.mxu0 0.0
  %582 = vmatpush1.msra.mxu0 0.0
  %583 = vmatprep.subr.mxu0 0.0
  %584 = vmatpush1.msra.mxu0 0.0
  %585 = vmatprep.subr.mxu0 0.0
  %586 = vmatpush1.msra.mxu0 0.0
  %587 = vmatprep.subr.mxu0 0.0
  %588 = vmatpush1.msra.mxu0 0.0
  %589 = vmatprep.subr.mxu0 0.0
  %590 = vmatpush1.msra.mxu0 0.0
  %591 = vmatprep.subr.mxu0 0.0
  %592 = vmatpush1.msra.mxu0 0.0
  %593 = vmatprep.subr.mxu0 0.0
  %594 = vmatpush1.msra.mxu0 0.0
  %595 = vmatprep.subr.mxu0 0.0
  %596 = vmatpush1.msra.mxu0 0.0
  %597 = vmatprep.subr.mxu0 0.0
  %598 = vmatpush1.msra.mxu0 0.0
  %599 = vmatprep.subr.mxu0 0.0
  %600 = vmatpush1.msra.mxu0 0.0
  %601 = vmatprep.subr.mxu0 0.0
  %602 = vmatpush1.msra.mxu0 0.0
  %603 = vmatprep.subr.mxu0 0.0
  %604 = vmatpush1.msra.mxu0 0.0
  %605 = vmatprep.subr.mxu0 0.0
  %606 = vmatpush1.msra.mxu0 0.0
  %607 = vmatprep.subr.mxu0 0.0
  %608 = vmatpush1.msra.mxu0 0.0
  %609 = vmatprep.subr.mxu0 0.0
  %610 = vmatpush1.msra.mxu0 0.0
  %611 = vmatprep.subr.mxu0 0.0
  %612 = vmatpush1.msra.mxu0 0.0
  %613 = vmatprep.subr.mxu0 0.0
  %614 = vmatpush1.msra.mxu0 0.0
  %615 = vmatprep.subr.mxu0 0.0
  %616 = vmatpush1.msra.mxu0 0.0
  %617 = vmatprep.subr.mxu0 0.0
  %618 = vmatpush1.msra.mxu0 0.0
  %619 = vmatprep.subr.mxu0 0.0
  %620 = vmatpush1.msra.mxu0 0.0
  %621 = vmatprep.subr.mxu0 0.0
  %622 = vmatpush1.msra.mxu0 0.0
  %623 = vmatprep.subr.mxu0 0.0
  %624 = vmatpush1.msra.mxu0 0.0
  %625 = vmatprep.subr.mxu0 0.0
  %626 = vmatpush1.msra.mxu0 0.0
  %627 = vmatprep.mubr.f32.mxu0 0.0
  %628 = vmatmul.mubr.f32.gmra.mrb[0].mxu0 %v561
  %v629 = vpop.f32.mrb[0].mxu0
  %v630 = vadd.f32 0.0, %v629
  %v631 = vpop.f32.mrb[0].mxu0
  %632 = vdwg.mxu0
  %v633 = vadd.f32 %v77, %v630
  %v634 = vxor.u32 %v633, 2147483648
  %v635 = vmul.f32 %v634, 1.442695
  %v636 = vpow.pop %v635
  %v637 = vadd.f32 %v636, 1.0
  %v638 = vrcp.pop %v637
  %v639 = vmul.f32 1.0, %v638
  %v640 = vmul.f32 %v639, 2.0
  %v641 = vsub.f32 %v640, 1.0
  %v642 = vmul.f32 %v639, %v551
  %644 = vrot.lane.b32.xlu0 %v641, 116
  %v645 = vpop.permute.xlu0 %644
  %v647 = vmul.f32 %v639, %v645
  %649 = vrot.lane.b32.xlu0 %v647, 6
  %v650 = vpop.permute.xlu0 %649
  %v652 = vadd.f32 %v642, %v650
  %v653 = vtanh.pop %v652
  %655 = vrot.lane.b32.xlu0 %v653, 12
  %v656 = vpop.permute.xlu0 %655
  %v658 = vmul.f32 %v639, %v656
  %660 = vrot.lane.b32.xlu0 %v658, 110
  %v661 = vpop.permute.xlu0 %660
  %v662 = vsel %vm148, %v661, 0
  %664 = vmatprep.subr.mxu0 0.0
  %665 = vmatpush1.msra.mxu0 %v153
  %666 = vmatprep.subr.mxu0 0.0
  %667 = vmatpush1.msra.mxu0 0.0
  %668 = vmatprep.subr.mxu0 0.0
  %669 = vmatpush1.msra.mxu0 0.0
  %670 = vmatprep.subr.mxu0 0.0
  %671 = vmatpush1.msra.mxu0 0.0
  %672 = vmatprep.subr.mxu0 0.0
  %673 = vmatpush1.msra.mxu0 0.0
  %674 = vmatprep.subr.mxu0 0.0
  %675 = vmatpush1.msra.mxu0 0.0
  %676 = vmatprep.subr.mxu0 0.0
  %677 = vmatpush1.msra.mxu0 0.0
  %678 = vmatprep.subr.mxu0 0.0
  %679 = vmatpush1.msra.mxu0 0.0
  %680 = vmatprep.subr.mxu0 0.0
  %681 = vmatpush1.msra.mxu0 0.0
  %682 = vmatprep.subr.mxu0 0.0
  %683 = vmatpush1.msra.mxu0 0.0
  %684 = vmatprep.subr.mxu0 0.0
  %685 = vmatpush1.msra.mxu0 0.0
  %686 = vmatprep.subr.mxu0 0.0
  %687 = vmatpush1.msra.mxu0 0.0
  %688 = vmatprep.subr.mxu0 0.0
  %689 = vmatpush1.msra.mxu0 0.0
  %690 = vmatprep.subr.mxu0 0.0
  %691 = vmatpush1.msra.mxu0 0.0
  %692 = vmatprep.subr.mxu0 0.0
  %693 = vmatpush1.msra.mxu0 0.0
  %694 = vmatprep.subr.mxu0 0.0
  %695 = vmatpush1.msra.mxu0 0.0
  %696 = vmatprep.subr.mxu0 0.0
  %697 = vmatpush1.msra.mxu0 0.0
  %698 = vmatprep.subr.mxu0 0.0
  %699 = vmatpush1.msra.mxu0 0.0
  %700 = vmatprep.subr.mxu0 0.0
  %701 = vmatpush1.msra.mxu0 0.0
  %702 = vmatprep.subr.mxu0 0.0
  %703 = vmatpush1.msra.mxu0 0.0
  %704 = vmatprep.subr.mxu0 0.0
  %705 = vmatpush1.msra.mxu0 0.0
  %706 = vmatprep.subr.mxu0 0.0
  %707 = vmatpush1.msra.mxu0 0.0
  %708 = vmatprep.subr.mxu0 0.0
  %709 = vmatpush1.msra.mxu0 0.0
  %710 = vmatprep.subr.mxu0 0.0
  %711 = vmatpush1.msra.mxu0 0.0
  %712 = vmatprep.subr.mxu0 0.0
  %713 = vmatpush1.msra.mxu0 0.0
  %714 = vmatprep.subr.mxu0 0.0
  %715 = vmatpush1.msra.mxu0 0.0
  %716 = vmatprep.subr.mxu0 0.0
  %717 = vmatpush1.msra.mxu0 0.0
  %718 = vmatprep.subr.mxu0 0.0
  %719 = vmatpush1.msra.mxu0 0.0
  %720 = vmatprep.subr.mxu0 0.0
  %721 = vmatpush1.msra.mxu0 0.0
  %722 = vmatprep.subr.mxu0 0.0
  %723 = vmatpush1.msra.mxu0 0.0
  %724 = vmatprep.subr.mxu0 0.0
  %725 = vmatpush1.msra.mxu0 0.0
  %726 = vmatprep.subr.mxu0 0.0
  %727 = vmatpush1.msra.mxu0 0.0
  %728 = vmatprep.mubr.f32.mxu0 0.0
  %729 = vmatmul.mubr.f32.gmra.mrb[0].mxu0 %v662
  %v730 = vpop.f32.mrb[0].mxu0
  %v731 = vadd.f32 0.0, %v730
  %v732 = vpop.f32.mrb[0].mxu0
  %733 = vdwg.mxu0
  %v734 = vadd.f32 %v83, %v731
  %v735 = vxor.u32 %v734, 2147483648
  %v736 = vmul.f32 %v735, 1.442695
  %v737 = vpow.pop %v736
  %v738 = vadd.f32 %v737, 1.0
  %v739 = vrcp.pop %v738
  %v740 = vmul.f32 1.0, %v739
  %v741 = vmul.f32 %v740, 2.0
  %v742 = vsub.f32 %v741, 1.0
  %v743 = vmul.f32 %v740, %v652
  %745 = vrot.lane.b32.xlu0 %v742, 116
  %v746 = vpop.permute.xlu0 %745
  %v748 = vmul.f32 %v740, %v746
  %750 = vrot.lane.b32.xlu0 %v748, 6
  %v751 = vpop.permute.xlu0 %750
  %v753 = vadd.f32 %v743, %v751
  %v754 = vtanh.pop %v753
  %756 = vrot.lane.b32.xlu0 %v754, 12
  %v757 = vpop.permute.xlu0 %756
  %v759 = vmul.f32 %v740, %v757
  %761 = vrot.lane.b32.xlu0 %v759, 110
  %v762 = vpop.permute.xlu0 %761
  %v763 = vsel %vm148, %v762, 0
  %765 = vmatprep.subr.mxu0 0.0
  %766 = vmatpush1.msra.mxu0 %v153
  %767 = vmatprep.subr.mxu0 0.0
  %768 = vmatpush1.msra.mxu0 0.0
  %769 = vmatprep.subr.mxu0 0.0
  %770 = vmatpush1.msra.mxu0 0.0
  %771 = vmatprep.subr.mxu0 0.0
  %772 = vmatpush1.msra.mxu0 0.0
  %773 = vmatprep.subr.mxu0 0.0
  %774 = vmatpush1.msra.mxu0 0.0
  %775 = vmatprep.subr.mxu0 0.0
  %776 = vmatpush1.msra.mxu0 0.0
  %777 = vmatprep.subr.mxu0 0.0
  %778 = vmatpush1.msra.mxu0 0.0
  %779 = vmatprep.subr.mxu0 0.0
  %780 = vmatpush1.msra.mxu0 0.0
  %781 = vmatprep.subr.mxu0 0.0
  %782 = vmatpush1.msra.mxu0 0.0
  %783 = vmatprep.subr.mxu0 0.0
  %784 = vmatpush1.msra.mxu0 0.0
  %785 = vmatprep.subr.mxu0 0.0
  %786 = vmatpush1.msra.mxu0 0.0
  %787 = vmatprep.subr.mxu0 0.0
  %788 = vmatpush1.msra.mxu0 0.0
  %789 = vmatprep.subr.mxu0 0.0
  %790 = vmatpush1.msra.mxu0 0.0
  %791 = vmatprep.subr.mxu0 0.0
  %792 = vmatpush1.msra.mxu0 0.0
  %793 = vmatprep.subr.mxu0 0.0
  %794 = vmatpush1.msra.mxu0 0.0
  %795 = vmatprep.subr.mxu0 0.0
  %796 = vmatpush1.msra.mxu0 0.0
  %797 = vmatprep.subr.mxu0 0.0
  %798 = vmatpush1.msra.mxu0 0.0
  %799 = vmatprep.subr.mxu0 0.0
  %800 = vmatpush1.msra.mxu0 0.0
  %801 = vmatprep.subr.mxu0 0.0
  %802 = vmatpush1.msra.mxu0 0.0
  %803 = vmatprep.subr.mxu0 0.0
  %804 = vmatpush1.msra.mxu0 0.0
  %805 = vmatprep.subr.mxu0 0.0
  %806 = vmatpush1.msra.mxu0 0.0
  %807 = vmatprep.subr.mxu0 0.0
  %808 = vmatpush1.msra.mxu0 0.0
  %809 = vmatprep.subr.mxu0 0.0
  %810 = vmatpush1.msra.mxu0 0.0
  %811 = vmatprep.subr.mxu0 0.0
  %812 = vmatpush1.msra.mxu0 0.0
  %813 = vmatprep.subr.mxu0 0.0
  %814 = vmatpush1.msra.mxu0 0.0
  %815 = vmatprep.subr.mxu0 0.0
  %816 = vmatpush1.msra.mxu0 0.0
  %817 = vmatprep.subr.mxu0 0.0
  %818 = vmatpush1.msra.mxu0 0.0
  %819 = vmatprep.subr.mxu0 0.0
  %820 = vmatpush1.msra.mxu0 0.0
  %821 = vmatprep.subr.mxu0 0.0
  %822 = vmatpush1.msra.mxu0 0.0
  %823 = vmatprep.subr.mxu0 0.0
  %824 = vmatpush1.msra.mxu0 0.0
  %825 = vmatprep.subr.mxu0 0.0
  %826 = vmatpush1.msra.mxu0 0.0
  %827 = vmatprep.subr.mxu0 0.0
  %828 = vmatpush1.msra.mxu0 0.0
  %829 = vmatprep.mubr.f32.mxu0 0.0
  %830 = vmatmul.mubr.f32.gmra.mrb[0].mxu0 %v763
  %v831 = vpop.f32.mrb[0].mxu0
  %v832 = vadd.f32 0.0, %v831
  %v833 = vpop.f32.mrb[0].mxu0
  %834 = vdwg.mxu0
  %v835 = vadd.f32 %v89, %v832
  %v836 = vxor.u32 %v835, 2147483648
  %v837 = vmul.f32 %v836, 1.442695
  %v838 = vpow.pop %v837
  %v839 = vadd.f32 %v838, 1.0
  %v840 = vrcp.pop %v839
  %v841 = vmul.f32 1.0, %v840
  %v842 = vmul.f32 %v841, 2.0
  %v843 = vsub.f32 %v842, 1.0
  %v844 = vmul.f32 %v841, %v753
  %846 = vrot.lane.b32.xlu0 %v843, 116
  %v847 = vpop.permute.xlu0 %846
  %v849 = vmul.f32 %v841, %v847
  %851 = vrot.lane.b32.xlu0 %v849, 6
  %v852 = vpop.permute.xlu0 %851
  %v854 = vadd.f32 %v844, %v852
  %v855 = vtanh.pop %v854
  %857 = vrot.lane.b32.xlu0 %v855, 12
  %v858 = vpop.permute.xlu0 %857
  %v860 = vmul.f32 %v841, %v858
  %862 = vrot.lane.b32.xlu0 %v860, 110
  %v863 = vpop.permute.xlu0 %862
  %v864 = vsel %vm148, %v863, 0
  %866 = vmatprep.subr.mxu0 0.0
  %867 = vmatpush1.msra.mxu0 %v153
  %868 = vmatprep.subr.mxu0 0.0
  %869 = vmatpush1.msra.mxu0 0.0
  %870 = vmatprep.subr.mxu0 0.0
  %871 = vmatpush1.msra.mxu0 0.0
  %872 = vmatprep.subr.mxu0 0.0
  %873 = vmatpush1.msra.mxu0 0.0
  %874 = vmatprep.subr.mxu0 0.0
  %875 = vmatpush1.msra.mxu0 0.0
  %876 = vmatprep.subr.mxu0 0.0
  %877 = vmatpush1.msra.mxu0 0.0
  %878 = vmatprep.subr.mxu0 0.0
  %879 = vmatpush1.msra.mxu0 0.0
  %880 = vmatprep.subr.mxu0 0.0
  %881 = vmatpush1.msra.mxu0 0.0
  %882 = vmatprep.subr.mxu0 0.0
  %883 = vmatpush1.msra.mxu0 0.0
  %884 = vmatprep.subr.mxu0 0.0
  %885 = vmatpush1.msra.mxu0 0.0
  %886 = vmatprep.subr.mxu0 0.0
  %887 = vmatpush1.msra.mxu0 0.0
  %888 = vmatprep.subr.mxu0 0.0
  %889 = vmatpush1.msra.mxu0 0.0
  %890 = vmatprep.subr.mxu0 0.0
  %891 = vmatpush1.msra.mxu0 0.0
  %892 = vmatprep.subr.mxu0 0.0
  %893 = vmatpush1.msra.mxu0 0.0
  %894 = vmatprep.subr.mxu0 0.0
  %895 = vmatpush1.msra.mxu0 0.0
  %896 = vmatprep.subr.mxu0 0.0
  %897 = vmatpush1.msra.mxu0 0.0
  %898 = vmatprep.subr.mxu0 0.0
  %899 = vmatpush1.msra.mxu0 0.0
  %900 = vmatprep.subr.mxu0 0.0
  %901 = vmatpush1.msra.mxu0 0.0
  %902 = vmatprep.subr.mxu0 0.0
  %903 = vmatpush1.msra.mxu0 0.0
  %904 = vmatprep.subr.mxu0 0.0
  %905 = vmatpush1.msra.mxu0 0.0
  %906 = vmatprep.subr.mxu0 0.0
  %907 = vmatpush1.msra.mxu0 0.0
  %908 = vmatprep.subr.mxu0 0.0
  %909 = vmatpush1.msra.mxu0 0.0
  %910 = vmatprep.subr.mxu0 0.0
  %911 = vmatpush1.msra.mxu0 0.0
  %912 = vmatprep.subr.mxu0 0.0
  %913 = vmatpush1.msra.mxu0 0.0
  %914 = vmatprep.subr.mxu0 0.0
  %915 = vmatpush1.msra.mxu0 0.0
  %916 = vmatprep.subr.mxu0 0.0
  %917 = vmatpush1.msra.mxu0 0.0
  %918 = vmatprep.subr.mxu0 0.0
  %919 = vmatpush1.msra.mxu0 0.0
  %920 = vmatprep.subr.mxu0 0.0
  %921 = vmatpush1.msra.mxu0 0.0
  %922 = vmatprep.subr.mxu0 0.0
  %923 = vmatpush1.msra.mxu0 0.0
  %924 = vmatprep.subr.mxu0 0.0
  %925 = vmatpush1.msra.mxu0 0.0
  %926 = vmatprep.subr.mxu0 0.0
  %927 = vmatpush1.msra.mxu0 0.0
  %928 = vmatprep.subr.mxu0 0.0
  %929 = vmatpush1.msra.mxu0 0.0
  %930 = vmatprep.mubr.f32.mxu0 0.0
  %931 = vmatmul.mubr.f32.gmra.mrb[0].mxu0 %v864
  %v932 = vpop.f32.mrb[0].mxu0
  %v933 = vadd.f32 0.0, %v932
  %v934 = vpop.f32.mrb[0].mxu0
  %935 = vdwg.mxu0
  %v936 = vadd.f32 %v95, %v933
  %v937 = vxor.u32 %v936, 2147483648
  %v938 = vmul.f32 %v937, 1.442695
  %v939 = vpow.pop %v938
  %v940 = vadd.f32 %v939, 1.0
  %v941 = vrcp.pop %v940
  %v942 = vmul.f32 1.0, %v941
  %v943 = vmul.f32 %v942, 2.0
  %v944 = vsub.f32 %v943, 1.0
  %v945 = vmul.f32 %v942, %v854
  %947 = vrot.lane.b32.xlu0 %v944, 116
  %v948 = vpop.permute.xlu0 %947
  %v950 = vmul.f32 %v942, %v948
  %952 = vrot.lane.b32.xlu0 %v950, 6
  %v953 = vpop.permute.xlu0 %952
  %v955 = vadd.f32 %v945, %v953
  %v956 = vtanh.pop %v955
  %958 = vrot.lane.b32.xlu0 %v956, 12
  %v959 = vpop.permute.xlu0 %958
  %v961 = vmul.f32 %v942, %v959
  %963 = vrot.lane.b32.xlu0 %v961, 110
  %v964 = vpop.permute.xlu0 %963
  %v965 = vsel %vm148, %v964, 0
  %967 = vmatprep.subr.mxu0 0.0
  %968 = vmatpush1.msra.mxu0 %v153
  %969 = vmatprep.subr.mxu0 0.0
  %970 = vmatpush1.msra.mxu0 0.0
  %971 = vmatprep.subr.mxu0 0.0
  %972 = vmatpush1.msra.mxu0 0.0
  %973 = vmatprep.subr.mxu0 0.0
  %974 = vmatpush1.msra.mxu0 0.0
  %975 = vmatprep.subr.mxu0 0.0
  %976 = vmatpush1.msra.mxu0 0.0
  %977 = vmatprep.subr.mxu0 0.0
  %978 = vmatpush1.msra.mxu0 0.0
  %979 = vmatprep.subr.mxu0 0.0
  %980 = vmatpush1.msra.mxu0 0.0
  %981 = vmatprep.subr.mxu0 0.0
  %982 = vmatpush1.msra.mxu0 0.0
  %983 = vmatprep.subr.mxu0 0.0
  %984 = vmatpush1.msra.mxu0 0.0
  %985 = vmatprep.subr.mxu0 0.0
  %986 = vmatpush1.msra.mxu0 0.0
  %987 = vmatprep.subr.mxu0 0.0
  %988 = vmatpush1.msra.mxu0 0.0
  %989 = vmatprep.subr.mxu0 0.0
  %990 = vmatpush1.msra.mxu0 0.0
  %991 = vmatprep.subr.mxu0 0.0
  %992 = vmatpush1.msra.mxu0 0.0
  %993 = vmatprep.subr.mxu0 0.0
  %994 = vmatpush1.msra.mxu0 0.0
  %995 = vmatprep.subr.mxu0 0.0
  %996 = vmatpush1.msra.mxu0 0.0
  %997 = vmatprep.subr.mxu0 0.0
  %998 = vmatpush1.msra.mxu0 0.0
  %999 = vmatprep.subr.mxu0 0.0
  %1000 = vmatpush1.msra.mxu0 0.0
  %1001 = vmatprep.subr.mxu0 0.0
  %1002 = vmatpush1.msra.mxu0 0.0
  %1003 = vmatprep.subr.mxu0 0.0
  %1004 = vmatpush1.msra.mxu0 0.0
  %1005 = vmatprep.subr.mxu0 0.0
  %1006 = vmatpush1.msra.mxu0 0.0
  %1007 = vmatprep.subr.mxu0 0.0
  %1008 = vmatpush1.msra.mxu0 0.0
  %1009 = vmatprep.subr.mxu0 0.0
  %1010 = vmatpush1.msra.mxu0 0.0
  %1011 = vmatprep.subr.mxu0 0.0
  %1012 = vmatpush1.msra.mxu0 0.0
  %1013 = vmatprep.subr.mxu0 0.0
  %1014 = vmatpush1.msra.mxu0 0.0
  %1015 = vmatprep.subr.mxu0 0.0
  %1016 = vmatpush1.msra.mxu0 0.0
  %1017 = vmatprep.subr.mxu0 0.0
  %1018 = vmatpush1.msra.mxu0 0.0
  %1019 = vmatprep.subr.mxu0 0.0
  %1020 = vmatpush1.msra.mxu0 0.0
  %1021 = vmatprep.subr.mxu0 0.0
  %1022 = vmatpush1.msra.mxu0 0.0
  %1023 = vmatprep.subr.mxu0 0.0
  %1024 = vmatpush1.msra.mxu0 0.0
  %1025 = vmatprep.subr.mxu0 0.0
  %1026 = vmatpush1.msra.mxu0 0.0
  %1027 = vmatprep.subr.mxu0 0.0
  %1028 = vmatpush1.msra.mxu0 0.0
  %1029 = vmatprep.subr.mxu0 0.0
  %1030 = vmatpush1.msra.mxu0 0.0
  %1031 = vmatprep.mubr.f32.mxu0 0.0
  %1032 = vmatmul.mubr.f32.gmra.mrb[0].mxu0 %v965
  %v1033 = vpop.f32.mrb[0].mxu0
  %v1034 = vadd.f32 0.0, %v1033
  %v1035 = vpop.f32.mrb[0].mxu0
  %1036 = vdwg.mxu0
  %v1037 = vadd.f32 %v101, %v1034
  %v1038 = vxor.u32 %v1037, 2147483648
  %v1039 = vmul.f32 %v1038, 1.442695
  %v1040 = vpow.pop %v1039
  %v1041 = vadd.f32 %v1040, 1.0
  %v1042 = vrcp.pop %v1041
  %v1043 = vmul.f32 1.0, %v1042
  %v1044 = vmul.f32 %v1043, 2.0
  %v1045 = vsub.f32 %v1044, 1.0
  %v1046 = vmul.f32 %v1043, %v955
  %1048 = vrot.lane.b32.xlu0 %v1045, 116
  %v1049 = vpop.permute.xlu0 %1048
  %v1051 = vmul.f32 %v1043, %v1049
  %1053 = vrot.lane.b32.xlu0 %v1051, 6
  %v1054 = vpop.permute.xlu0 %1053
  %v1056 = vadd.f32 %v1046, %v1054
  %v1057 = vtanh.pop %v1056
  %1059 = vrot.lane.b32.xlu0 %v1057, 12
  %v1060 = vpop.permute.xlu0 %1059
  %v1062 = vmul.f32 %v1043, %v1060
  %1064 = vrot.lane.b32.xlu0 %v1062, 110
  %v1065 = vpop.permute.xlu0 %1064
  %v1066 = vsel %vm148, %v1065, 0
  %1068 = vmatprep.subr.mxu0 0.0
  %1069 = vmatpush1.msra.mxu0 %v153
  %1070 = vmatprep.subr.mxu0 0.0
  %1071 = vmatpush1.msra.mxu0 0.0
  %1072 = vmatprep.subr.mxu0 0.0
  %1073 = vmatpush1.msra.mxu0 0.0
  %1074 = vmatprep.subr.mxu0 0.0
  %1075 = vmatpush1.msra.mxu0 0.0
  %1076 = vmatprep.subr.mxu0 0.0
  %1077 = vmatpush1.msra.mxu0 0.0
  %1078 = vmatprep.subr.mxu0 0.0
  %1079 = vmatpush1.msra.mxu0 0.0
  %1080 = vmatprep.subr.mxu0 0.0
  %1081 = vmatpush1.msra.mxu0 0.0
  %1082 = vmatprep.subr.mxu0 0.0
  %1083 = vmatpush1.msra.mxu0 0.0
  %1084 = vmatprep.subr.mxu0 0.0
  %1085 = vmatpush1.msra.mxu0 0.0
  %1086 = vmatprep.subr.mxu0 0.0
  %1087 = vmatpush1.msra.mxu0 0.0
  %1088 = vmatprep.subr.mxu0 0.0
  %1089 = vmatpush1.msra.mxu0 0.0
  %1090 = vmatprep.subr.mxu0 0.0
  %1091 = vmatpush1.msra.mxu0 0.0
  %1092 = vmatprep.subr.mxu0 0.0
  %1093 = vmatpush1.msra.mxu0 0.0
  %1094 = vmatprep.subr.mxu0 0.0
  %1095 = vmatpush1.msra.mxu0 0.0
  %1096 = vmatprep.subr.mxu0 0.0
  %1097 = vmatpush1.msra.mxu0 0.0
  %1098 = vmatprep.subr.mxu0 0.0
  %1099 = vmatpush1.msra.mxu0 0.0
  %1100 = vmatprep.subr.mxu0 0.0
  %1101 = vmatpush1.msra.mxu0 0.0
  %1102 = vmatprep.subr.mxu0 0.0
  %1103 = vmatpush1.msra.mxu0 0.0
  %1104 = vmatprep.subr.mxu0 0.0
  %1105 = vmatpush1.msra.mxu0 0.0
  %1106 = vmatprep.subr.mxu0 0.0
  %1107 = vmatpush1.msra.mxu0 0.0
  %1108 = vmatprep.subr.mxu0 0.0
  %1109 = vmatpush1.msra.mxu0 0.0
  %1110 = vmatprep.subr.mxu0 0.0
  %1111 = vmatpush1.msra.mxu0 0.0
  %1112 = vmatprep.subr.mxu0 0.0
  %1113 = vmatpush1.msra.mxu0 0.0
  %1114 = vmatprep.subr.mxu0 0.0
  %1115 = vmatpush1.msra.mxu0 0.0
  %1116 = vmatprep.subr.mxu0 0.0
  %1117 = vmatpush1.msra.mxu0 0.0
  %1118 = vmatprep.subr.mxu0 0.0
  %1119 = vmatpush1.msra.mxu0 0.0
  %1120 = vmatprep.subr.mxu0 0.0
  %1121 = vmatpush1.msra.mxu0 0.0
  %1122 = vmatprep.subr.mxu0 0.0
  %1123 = vmatpush1.msra.mxu0 0.0
  %1124 = vmatprep.subr.mxu0 0.0
  %1125 = vmatpush1.msra.mxu0 0.0
  %1126 = vmatprep.subr.mxu0 0.0
  %1127 = vmatpush1.msra.mxu0 0.0
  %1128 = vmatprep.subr.mxu0 0.0
  %1129 = vmatpush1.msra.mxu0 0.0
  %1130 = vmatprep.subr.mxu0 0.0
  %1131 = vmatpush1.msra.mxu0 0.0
  %1132 = vmatprep.mubr.f32.mxu0 0.0
  %1133 = vmatmul.mubr.f32.gmra.mrb[0].mxu0 %v1066
  %v1134 = vpop.f32.mrb[0].mxu0
  %v1135 = vadd.f32 0.0, %v1134
  %v1136 = vpop.f32.mrb[0].mxu0
  %1137 = vdwg.mxu0
  %v1138 = vadd.f32 %v107, %v1135
  %v1139 = vxor.u32 %v1138, 2147483648
  %v1140 = vmul.f32 %v1139, 1.442695
  %v1141 = vpow.pop %v1140
  %v1142 = vadd.f32 %v1141, 1.0
  %v1143 = vrcp.pop %v1142
  %v1144 = vmul.f32 1.0, %v1143
  %v1145 = vmul.f32 %v1144, 2.0
  %v1146 = vsub.f32 %v1145, 1.0
  %v1147 = vmul.f32 %v1144, %v1056
  %1149 = vrot.lane.b32.xlu0 %v1146, 116
  %v1150 = vpop.permute.xlu0 %1149
  %v1152 = vmul.f32 %v1144, %v1150
  %1154 = vrot.lane.b32.xlu0 %v1152, 6
  %v1155 = vpop.permute.xlu0 %1154
  %v1157 = vadd.f32 %v1147, %v1155
  %v1158 = vtanh.pop %v1157
  %1160 = vrot.lane.b32.xlu0 %v1158, 12
  %v1161 = vpop.permute.xlu0 %1160
  %v1163 = vmul.f32 %v1144, %v1161
  %1165 = vrot.lane.b32.xlu0 %v1163, 110
  %v1166 = vpop.permute.xlu0 %1165
  %v1167 = vsel %vm148, %v1166, 0
  %1169 = vmatprep.subr.mxu0 0.0
  %1170 = vmatpush1.msra.mxu0 %v153
  %1171 = vmatprep.subr.mxu0 0.0
  %1172 = vmatpush1.msra.mxu0 0.0
  %1173 = vmatprep.subr.mxu0 0.0
  %1174 = vmatpush1.msra.mxu0 0.0
  %1175 = vmatprep.subr.mxu0 0.0
  %1176 = vmatpush1.msra.mxu0 0.0
  %1177 = vmatprep.subr.mxu0 0.0
  %1178 = vmatpush1.msra.mxu0 0.0
  %1179 = vmatprep.subr.mxu0 0.0
  %1180 = vmatpush1.msra.mxu0 0.0
  %1181 = vmatprep.subr.mxu0 0.0
  %1182 = vmatpush1.msra.mxu0 0.0
  %1183 = vmatprep.subr.mxu0 0.0
  %1184 = vmatpush1.msra.mxu0 0.0
  %1185 = vmatprep.subr.mxu0 0.0
  %1186 = vmatpush1.msra.mxu0 0.0
  %1187 = vmatprep.subr.mxu0 0.0
  %1188 = vmatpush1.msra.mxu0 0.0
  %1189 = vmatprep.subr.mxu0 0.0
  %1190 = vmatpush1.msra.mxu0 0.0
  %1191 = vmatprep.subr.mxu0 0.0
  %1192 = vmatpush1.msra.mxu0 0.0
  %1193 = vmatprep.subr.mxu0 0.0
  %1194 = vmatpush1.msra.mxu0 0.0
  %1195 = vmatprep.subr.mxu0 0.0
  %1196 = vmatpush1.msra.mxu0 0.0
  %1197 = vmatprep.subr.mxu0 0.0
  %1198 = vmatpush1.msra.mxu0 0.0
  %1199 = vmatprep.subr.mxu0 0.0
  %1200 = vmatpush1.msra.mxu0 0.0
  %1201 = vmatprep.subr.mxu0 0.0
  %1202 = vmatpush1.msra.mxu0 0.0
  %1203 = vmatprep.subr.mxu0 0.0
  %1204 = vmatpush1.msra.mxu0 0.0
  %1205 = vmatprep.subr.mxu0 0.0
  %1206 = vmatpush1.msra.mxu0 0.0
  %1207 = vmatprep.subr.mxu0 0.0
  %1208 = vmatpush1.msra.mxu0 0.0
  %1209 = vmatprep.subr.mxu0 0.0
  %1210 = vmatpush1.msra.mxu0 0.0
  %1211 = vmatprep.subr.mxu0 0.0
  %1212 = vmatpush1.msra.mxu0 0.0
  %1213 = vmatprep.subr.mxu0 0.0
  %1214 = vmatpush1.msra.mxu0 0.0
  %1215 = vmatprep.subr.mxu0 0.0
  %1216 = vmatpush1.msra.mxu0 0.0
  %1217 = vmatprep.subr.mxu0 0.0
  %1218 = vmatpush1.msra.mxu0 0.0
  %1219 = vmatprep.subr.mxu0 0.0
  %1220 = vmatpush1.msra.mxu0 0.0
  %1221 = vmatprep.subr.mxu0 0.0
  %1222 = vmatpush1.msra.mxu0 0.0
  %1223 = vmatprep.subr.mxu0 0.0
  %1224 = vmatpush1.msra.mxu0 0.0
  %1225 = vmatprep.subr.mxu0 0.0
  %1226 = vmatpush1.msra.mxu0 0.0
  %1227 = vmatprep.subr.mxu0 0.0
  %1228 = vmatpush1.msra.mxu0 0.0
  %1229 = vmatprep.subr.mxu0 0.0
  %1230 = vmatpush1.msra.mxu0 0.0
  %1231 = vmatprep.subr.mxu0 0.0
  %1232 = vmatpush1.msra.mxu0 0.0
  %1233 = vmatprep.mubr.f32.mxu0 0.0
  %1234 = vmatmul.mubr.f32.gmra.mrb[0].mxu0 %v1167
  %v1235 = vpop.f32.mrb[0].mxu0
  %v1236 = vadd.f32 0.0, %v1235
  %v1237 = vpop.f32.mrb[0].mxu0
  %1238 = vdwg.mxu0
  %v1239 = vadd.f32 %v113, %v1236
  %v1240 = vxor.u32 %v1239, 2147483648
  %v1241 = vmul.f32 %v1240, 1.442695
  %v1242 = vpow.pop %v1241
  %v1243 = vadd.f32 %v1242, 1.0
  %v1244 = vrcp.pop %v1243
  %v1245 = vmul.f32 1.0, %v1244
  %v1246 = vmul.f32 %v1245, 2.0
  %v1247 = vsub.f32 %v1246, 1.0
  %v1248 = vmul.f32 %v1245, %v1157
  %1250 = vrot.lane.b32.xlu0 %v1247, 116
  %v1251 = vpop.permute.xlu0 %1250
  %v1253 = vmul.f32 %v1245, %v1251
  %1255 = vrot.lane.b32.xlu0 %v1253, 6
  %v1256 = vpop.permute.xlu0 %1255
  %v1258 = vadd.f32 %v1248, %v1256
  %v1259 = vtanh.pop %v1258
  %1261 = vrot.lane.b32.xlu0 %v1259, 12
  %v1262 = vpop.permute.xlu0 %1261
  %v1264 = vmul.f32 %v1245, %v1262
  %1266 = vrot.lane.b32.xlu0 %v1264, 110
  %v1267 = vpop.permute.xlu0 %1266
  %v1268 = vsel %vm148, %v1267, 0
  %1270 = vmatprep.subr.mxu0 0.0
  %1271 = vmatpush1.msra.mxu0 %v153
  %1272 = vmatprep.subr.mxu0 0.0
  %1273 = vmatpush1.msra.mxu0 0.0
  %1274 = vmatprep.subr.mxu0 0.0
  %1275 = vmatpush1.msra.mxu0 0.0
  %1276 = vmatprep.subr.mxu0 0.0
  %1277 = vmatpush1.msra.mxu0 0.0
  %1278 = vmatprep.subr.mxu0 0.0
  %1279 = vmatpush1.msra.mxu0 0.0
  %1280 = vmatprep.subr.mxu0 0.0
  %1281 = vmatpush1.msra.mxu0 0.0
  %1282 = vmatprep.subr.mxu0 0.0
  %1283 = vmatpush1.msra.mxu0 0.0
  %1284 = vmatprep.subr.mxu0 0.0
  %1285 = vmatpush1.msra.mxu0 0.0
  %1286 = vmatprep.subr.mxu0 0.0
  %1287 = vmatpush1.msra.mxu0 0.0
  %1288 = vmatprep.subr.mxu0 0.0
  %1289 = vmatpush1.msra.mxu0 0.0
  %1290 = vmatprep.subr.mxu0 0.0
  %1291 = vmatpush1.msra.mxu0 0.0
  %1292 = vmatprep.subr.mxu0 0.0
  %1293 = vmatpush1.msra.mxu0 0.0
  %1294 = vmatprep.subr.mxu0 0.0
  %1295 = vmatpush1.msra.mxu0 0.0
  %1296 = vmatprep.subr.mxu0 0.0
  %1297 = vmatpush1.msra.mxu0 0.0
  %1298 = vmatprep.subr.mxu0 0.0
  %1299 = vmatpush1.msra.mxu0 0.0
  %1300 = vmatprep.subr.mxu0 0.0
  %1301 = vmatpush1.msra.mxu0 0.0
  %1302 = vmatprep.subr.mxu0 0.0
  %1303 = vmatpush1.msra.mxu0 0.0
  %1304 = vmatprep.subr.mxu0 0.0
  %1305 = vmatpush1.msra.mxu0 0.0
  %1306 = vmatprep.subr.mxu0 0.0
  %1307 = vmatpush1.msra.mxu0 0.0
  %1308 = vmatprep.subr.mxu0 0.0
  %1309 = vmatpush1.msra.mxu0 0.0
  %1310 = vmatprep.subr.mxu0 0.0
  %1311 = vmatpush1.msra.mxu0 0.0
  %1312 = vmatprep.subr.mxu0 0.0
  %1313 = vmatpush1.msra.mxu0 0.0
  %1314 = vmatprep.subr.mxu0 0.0
  %1315 = vmatpush1.msra.mxu0 0.0
  %1316 = vmatprep.subr.mxu0 0.0
  %1317 = vmatpush1.msra.mxu0 0.0
  %1318 = vmatprep.subr.mxu0 0.0
  %1319 = vmatpush1.msra.mxu0 0.0
  %1320 = vmatprep.subr.mxu0 0.0
  %1321 = vmatpush1.msra.mxu0 0.0
  %1322 = vmatprep.subr.mxu0 0.0
  %1323 = vmatpush1.msra.mxu0 0.0
  %1324 = vmatprep.subr.mxu0 0.0
  %1325 = vmatpush1.msra.mxu0 0.0
  %1326 = vmatprep.subr.mxu0 0.0
  %1327 = vmatpush1.msra.mxu0 0.0
  %1328 = vmatprep.subr.mxu0 0.0
  %1329 = vmatpush1.msra.mxu0 0.0
  %1330 = vmatprep.subr.mxu0 0.0
  %1331 = vmatpush1.msra.mxu0 0.0
  %1332 = vmatprep.subr.mxu0 0.0
  %1333 = vmatpush1.msra.mxu0 0.0
  %1334 = vmatprep.mubr.f32.mxu0 0.0
  %1335 = vmatmul.mubr.f32.gmra.mrb[0].mxu0 %v1268
  %v1336 = vpop.f32.mrb[0].mxu0
  %v1337 = vadd.f32 0.0, %v1336
  %v1338 = vpop.f32.mrb[0].mxu0
  %1339 = vdwg.mxu0
  %v1340 = vadd.f32 %v119, %v1337
  %v1341 = vxor.u32 %v1340, 2147483648
  %v1342 = vmul.f32 %v1341, 1.442695
  %v1343 = vpow.pop %v1342
  %v1344 = vadd.f32 %v1343, 1.0
  %v1345 = vrcp.pop %v1344
  %v1346 = vmul.f32 1.0, %v1345
  %v1347 = vmul.f32 %v1346, 2.0
  %v1348 = vsub.f32 %v1347, 1.0
  %v1349 = vmul.f32 %v1346, %v1258
  %1351 = vrot.lane.b32.xlu0 %v1348, 116
  %v1352 = vpop.permute.xlu0 %1351
  %v1354 = vmul.f32 %v1346, %v1352
  %1356 = vrot.lane.b32.xlu0 %v1354, 6
  %v1357 = vpop.permute.xlu0 %1356
  %v1359 = vadd.f32 %v1349, %v1357
  %v1360 = vtanh.pop %v1359
  %1362 = vrot.lane.b32.xlu0 %v1360, 12
  %v1363 = vpop.permute.xlu0 %1362
  %v1365 = vmul.f32 %v1346, %v1363
  %1367 = vrot.lane.b32.xlu0 %v1365, 110
  %v1368 = vpop.permute.xlu0 %1367
  %v1369 = vsel %vm148, %v1368, 0
  %1371 = vmatprep.subr.mxu0 0.0
  %1372 = vmatpush1.msra.mxu0 %v153
  %1373 = vmatprep.subr.mxu0 0.0
  %1374 = vmatpush1.msra.mxu0 0.0
  %1375 = vmatprep.subr.mxu0 0.0
  %1376 = vmatpush1.msra.mxu0 0.0
  %1377 = vmatprep.subr.mxu0 0.0
  %1378 = vmatpush1.msra.mxu0 0.0
  %1379 = vmatprep.subr.mxu0 0.0
  %1380 = vmatpush1.msra.mxu0 0.0
  %1381 = vmatprep.subr.mxu0 0.0
  %1382 = vmatpush1.msra.mxu0 0.0
  %1383 = vmatprep.subr.mxu0 0.0
  %1384 = vmatpush1.msra.mxu0 0.0
  %1385 = vmatprep.subr.mxu0 0.0
  %1386 = vmatpush1.msra.mxu0 0.0
  %1387 = vmatprep.subr.mxu0 0.0
  %1388 = vmatpush1.msra.mxu0 0.0
  %1389 = vmatprep.subr.mxu0 0.0
  %1390 = vmatpush1.msra.mxu0 0.0
  %1391 = vmatprep.subr.mxu0 0.0
  %1392 = vmatpush1.msra.mxu0 0.0
  %1393 = vmatprep.subr.mxu0 0.0
  %1394 = vmatpush1.msra.mxu0 0.0
  %1395 = vmatprep.subr.mxu0 0.0
  %1396 = vmatpush1.msra.mxu0 0.0
  %1397 = vmatprep.subr.mxu0 0.0
  %1398 = vmatpush1.msra.mxu0 0.0
  %1399 = vmatprep.subr.mxu0 0.0
  %1400 = vmatpush1.msra.mxu0 0.0
  %1401 = vmatprep.subr.mxu0 0.0
  %1402 = vmatpush1.msra.mxu0 0.0
  %1403 = vmatprep.subr.mxu0 0.0
  %1404 = vmatpush1.msra.mxu0 0.0
  %1405 = vmatprep.subr.mxu0 0.0
  %1406 = vmatpush1.msra.mxu0 0.0
  %1407 = vmatprep.subr.mxu0 0.0
  %1408 = vmatpush1.msra.mxu0 0.0
  %1409 = vmatprep.subr.mxu0 0.0
  %1410 = vmatpush1.msra.mxu0 0.0
  %1411 = vmatprep.subr.mxu0 0.0
  %1412 = vmatpush1.msra.mxu0 0.0
  %1413 = vmatprep.subr.mxu0 0.0
  %1414 = vmatpush1.msra.mxu0 0.0
  %1415 = vmatprep.subr.mxu0 0.0
  %1416 = vmatpush1.msra.mxu0 0.0
  %1417 = vmatprep.subr.mxu0 0.0
  %1418 = vmatpush1.msra.mxu0 0.0
  %1419 = vmatprep.subr.mxu0 0.0
  %1420 = vmatpush1.msra.mxu0 0.0
  %1421 = vmatprep.subr.mxu0 0.0
  %1422 = vmatpush1.msra.mxu0 0.0
  %1423 = vmatprep.subr.mxu0 0.0
  %1424 = vmatpush1.msra.mxu0 0.0
  %1425 = vmatprep.subr.mxu0 0.0
  %1426 = vmatpush1.msra.mxu0 0.0
  %1427 = vmatprep.subr.mxu0 0.0
  %1428 = vmatpush1.msra.mxu0 0.0
  %1429 = vmatprep.subr.mxu0 0.0
  %1430 = vmatpush1.msra.mxu0 0.0
  %1431 = vmatprep.subr.mxu0 0.0
  %1432 = vmatpush1.msra.mxu0 0.0
  %1433 = vmatprep.subr.mxu0 0.0
  %1434 = vmatpush1.msra.mxu0 0.0
  %1435 = vmatprep.mubr.f32.mxu0 0.0
  %1436 = vmatmul.mubr.f32.gmra.mrb[0].mxu0 %v1369
  %v1437 = vpop.f32.mrb[0].mxu0
  %v1438 = vadd.f32 0.0, %v1437
  %v1439 = vpop.f32.mrb[0].mxu0
  %1440 = vdwg.mxu0
  %v1441 = vadd.f32 %v125, %v1438
  %v1442 = vxor.u32 %v1441, 2147483648
  %v1443 = vmul.f32 %v1442, 1.442695
  %v1444 = vpow.pop %v1443
  %v1445 = vadd.f32 %v1444, 1.0
  %v1446 = vrcp.pop %v1445
  %v1447 = vmul.f32 1.0, %v1446
  %v1448 = vmul.f32 %v1447, 2.0
  %v1449 = vsub.f32 %v1448, 1.0
  %v1450 = vmul.f32 %v1447, %v1359
  %1452 = vrot.lane.b32.xlu0 %v1449, 116
  %v1453 = vpop.permute.xlu0 %1452
  %v1455 = vmul.f32 %v1447, %v1453
  %1457 = vrot.lane.b32.xlu0 %v1455, 6
  %v1458 = vpop.permute.xlu0 %1457
  %v1460 = vadd.f32 %v1450, %v1458
  %v1461 = vtanh.pop %v1460
  %1463 = vrot.lane.b32.xlu0 %v1461, 12
  %v1464 = vpop.permute.xlu0 %1463
  %v1466 = vmul.f32 %v1447, %v1464
  %v1467 = vld [vmem:[%s4] sm:$0x1]
  %v1470 = vunpack.c.l.s4 1966171168
  %v1471 = vunpack.c.0.s8 %v1470
  %v1472 = vlaneseq
  %v1473 = vshrl.u32 %v1472, 7
  %v1474 = vsub.s32 %v1471, %v1473
  %v1475 = vrot.slane %v1466, %v1474
  %v1476 = vcombine.high %v1475, %v1475
  %v1478 = vunpack.c.l.s4 1966171168
  %v1479 = vunpack.c.0.s8 %v1478
  %v1480 = vlaneseq
  %v1481 = vshrl.u32 %v1480, 7
  %v1482 = vsub.s32 %v1479, %v1481
  %v1483 = vrot.slane %v1475, %v1482
  %v1485 = vunpack.c.l.s4 1966171168
  %v1486 = vunpack.c.0.s8 %v1485
  %v1487 = vlaneseq
  %v1488 = vshrl.u32 %v1487, 7
  %v1489 = vsub.s32 %v1486, %v1488
  %v1490 = vrot.slane %v1476, %v1489
  %1494 = vrot.lane.b32.xlu0 %v1467, 18
  %v1495 = vpop.permute.xlu0 %1494
  %v1497 = vmul.f32 %v1483, %v1495
  %v1498 = vmul.f32 %v1490, %v1495
  %v1501 = vlaneseq
  %v1502 = vshrl.u32 %v1501, 7
  %v1503 = vsub.s32 0, %v1502
  %v1504 = vrot.slane %v1497, %v1503
  %v1505 = vlaneseq
  %v1506 = vshrl.u32 %v1505, 7
  %v1507 = vsub.s32 0, %v1506
  %v1508 = vrot.slane %v1498, %v1507
  %1509 = vrot.lane.b32.xlu0 %v1504, 110
  %v1510 = vpop.permute.xlu0 %1509
  %1511 = vrot.lane.b32.xlu0 %v1508, 110
  %v1512 = vpop.permute.xlu0 %1511
  %vm1515 = vcmask 40960
  %v1516 = vsel %vm1515, %v1510, 0.0
  %1517 = vadd.xlane.f32.xlu0 %v1516
  %v1518 = vpop.xlane.xlu0 %1517
  %v1519 = vsel %vm1515, %v1512, 0.0
  %1520 = vadd.xlane.f32.xlu0 %v1519
  %v1521 = vpop.xlane.xlu0 %1520
  %v1522 = vld [vmem:[#allocation2] sm:$0x1]
  %v1524 = vlaneseq
  %v1525 = vshrl.u32 %v1524, 7
  %v1526 = vsub.s32 0, %v1525
  %v1527 = vrot.slane %v1522, %v1526
  %1529 = vbcast.lane.b32.xlu0 %v1527, 256
  %v1530 = vpop.permute.xlu0 %1529
  %v1532 = vadd.f32 %v1518, %v1530
  %v1533 = vadd.f32 %v1521, %v1530
  %v1536 = vrot.slane %v1533, 7
  %vm1537 = vcmask 1041409
  %v1538 = vsel %vm1537, %v1536, %v1532
  %vm1540 = vcmask 1024
  %1541 = vst.msk [vmem:[%s6] sm:$0x3] %vm1540, %v1538
  // Predicated region
  $region26: #{lstm_forward.1} parent=0 // pred_check
    _
  $region27: #{lstm_forward.1} parent=0 // pred_check_branch
    %1543 = sbr.rel (0) target = $region29
  $region28: #{lstm_forward.1} parent=0 // pred_region
    _
  $region29: #{lstm_forward.1} parent=0 // pred_fallthru
    _
  // Predicated region
  $region30: #{lstm_forward.1} parent=0 // pred_check
    _
  $region31: #{lstm_forward.1} parent=0 // pred_check_branch
    %1545 = sbr.rel (0) target = $region33
  $region32: #{lstm_forward.1} parent=0 // pred_region
    _
  $region33: #{lstm_forward.1} parent=0 // pred_fallthru
    _

</llo_original>
